<compile_context>
chip_gen: v5e
topology: v5e:2x2
jax: 0.10.0
libtpu: 0.0.40
codegen_flags: <defaults>
</compile_context>

<pallas_src>
import functools

import jax
import jax.numpy as jnp
import numpy as np
from jax import lax
from jax.experimental import pallas as pl
from jax.experimental.pallas import tpu as pltpu

BN_EPS = 1e-5  # nn.BatchNorm2d default


# --------------------------- fused Pallas kernel -----------------------------

def _decoder_kernel(inv_cnt,
                    x_ref, skip_ref,
                    wt0_ref, wt1_ref, btw_ref, p0_ref, p1_ref,
                    s0_ref, s1_ref, s2_ref,
                    w1b_ref, g1w_ref, b1w_ref, bsel1_ref,
                    w2b_ref, g2w_ref, b2w_ref, bsel2_ref,
                    o_ref):
    f32, bf16 = jnp.float32, jnp.bfloat16

    # ---- ConvTranspose2d(k=2, s=2) ------------------------------------------
    # One matmul per output-row parity: WT_dy scatters each input pixel's two
    # x-taps to lanes (2w+dx)*Ch + c, and the 0/1 matrices P_dy interleave the
    # even/odd output rows -- interleave done on the MXU, no reshapes.
    x = x_ref[...]                                                   # (N*H, W*Cin) bf16
    a0 = jnp.dot(x, wt0_ref[...], preferred_element_type=f32)        # even rows
    a1 = jnp.dot(x, wt1_ref[...], preferred_element_type=f32)        # odd rows
    up = (jnp.dot(p0_ref[...], a0, preferred_element_type=f32)
          + jnp.dot(p1_ref[...], a1, preferred_element_type=f32)
          + btw_ref[...])                                            # (N*2H, 2W*Ch) f32

    # ---- torch.cat([x_copy, up], dim=1): lane-axis concat in VMEM -----------
    cat = jnp.concatenate([skip_ref[...], up.astype(bf16)], axis=1)  # (N*2H, 2W*Cin)

    # ---- fused Conv3x3(pad=1, no bias) + BatchNorm(batch stats) + ReLU ------
    def conv_bn_relu(inp_bf, wbig_ref, gw_ref, bw_ref, bsel_ref):
        # Vertically shifted copies of the row slab (the 0/1 matrices S_dy also
        # encode the zero rows of the spatial padding), lane-concatenated into
        # an im2col slab, then ONE deep-K MXU matmul (horizontal padding is
        # absorbed into the packed weight matrix).
        rows = [jnp.dot(s_ref[...], inp_bf, preferred_element_type=f32).astype(bf16)
                for s_ref in (s0_ref, s1_ref, s2_ref)]
        patch = jnp.concatenate(rows, axis=1)                        # (R, 3*L) bf16
        acc = jnp.dot(patch, wbig_ref[...], preferred_element_type=f32)  # (R, Lout) f32

        # One-pass training-mode batch statistics (biased variance), all f32.
        ssum = jnp.sum(acc, axis=0, keepdims=True)                   # (1, Lout)
        sqsum = jnp.sum(acc * acc, axis=0, keepdims=True)
        mean = jnp.dot(ssum, bsel_ref[...], preferred_element_type=f32) * inv_cnt
        ex2 = jnp.dot(sqsum, bsel_ref[...], preferred_element_type=f32) * inv_cnt
        inv_std = lax.rsqrt(ex2 - mean * mean + BN_EPS)              # EUP
        scale = gw_ref[...] * inv_std                                # fused affine
        shift = bw_ref[...] - mean * scale
        return jnp.maximum(acc * scale + shift, 0.0)                 # (R, Lout) f32

    y1 = conv_bn_relu(cat, w1b_ref, g1w_ref, b1w_ref, bsel1_ref)
    y2 = conv_bn_relu(y1.astype(bf16), w2b_ref, g2w_ref, b2w_ref, bsel2_ref)

    # Lane-dense (exactly 128 lanes here) output store.
    o_ref[...] = y2


# --------------------------- pallas_call wrapper ------------------------------

def _full_spec(shape):
    nd = len(shape)
    return pl.BlockSpec(tuple(shape), lambda i, _nd=nd: (0,) * _nd)


def unet_decoder_forward(kp, x_copy_nchw, x_nchw, interpolate=True):
    """Pallas implementation of _UNetDecoder.forward.  I/O is NCHW like PyTorch."""
    N, Cin, H, W = x_nchw.shape
    _, Ch, Hc, Wc = x_copy_nchw.shape
    H2, W2 = 2 * H, 2 * W
    if Hc != H2 or Wc != W2:
        # TODO(synk): F.interpolate(mode='bilinear', align_corners=True) / F.pad
        # mismatch branch not implemented; even spatial dims never trigger it.
        raise NotImplementedError("spatial size mismatch branch not implemented")

    # NCHW -> NHWC -> row-flat 2-D slabs (row = (n, image_row), lane = (x, c)).
    x_rows = jnp.transpose(x_nchw, (0, 2, 3, 1)).reshape(N * H, W * Cin)
    skip_rows = jnp.transpose(x_copy_nchw, (0, 2, 3, 1)).reshape(N * H2, W2 * Ch)
    x_rows = x_rows.astype(jnp.bfloat16)
    skip_rows = skip_rows.astype(jnp.bfloat16)

    lane_out = kp["g2w"].shape[1]            # W2 * Cout
    Cout = lane_out // W2
    inv_cnt = 1.0 / float(N * H2 * W2)       # BN element count per channel

    args = (x_rows, skip_rows,
            kp["wt0"], kp["wt1"], kp["btw"], kp["p0"], kp["p1"],
            kp["s0"], kp["s1"], kp["s2"],
            kp["w1b"], kp["g1w"], kp["b1w"], kp["bsel1"],
            kp["w2b"], kp["g2w"], kp["b2w"], kp["bsel2"])

    out_rows = pl.pallas_call(
        functools.partial(_decoder_kernel, inv_cnt),
        out_shape=jax.ShapeDtypeStruct((N * H2, lane_out), jnp.float32),
        grid=(1,),
        in_specs=[_full_spec(a.shape) for a in args],
        out_specs=_full_spec((N * H2, lane_out)),
        compiler_params=pltpu.CompilerParams(dimension_semantics=("arbitrary",)),
    )(*args)

    out = out_rows.reshape(N, H2, W2, Cout)  # free row-major reshape
    return jnp.transpose(out, (0, 3, 1, 2))  # back to NCHW


# --------------------------- parameters --------------------------------------

def init_params(key, in_channels, out_channels):
    """Deterministic synthetic parameters in PyTorch layout."""
    Ch = in_channels // 2          # ConvTranspose2d output channels
    Ci = out_channels // 2         # x2conv inner channels
    ks = jax.random.split(key, 8)
    raw = {
        "wt4": 0.1 * jax.random.normal(ks[0], (in_channels, Ch, 2, 2), jnp.float32),
        "bt":  0.1 * jax.random.normal(ks[1], (Ch,), jnp.float32),
        "w1":  0.1 * jax.random.normal(ks[2], (Ci, in_channels, 3, 3), jnp.float32),
        "g1":  1.0 + 0.1 * jax.random.normal(ks[3], (Ci,), jnp.float32),
        "b1":  0.1 * jax.random.normal(ks[4], (Ci,), jnp.float32),
        "w2":  0.1 * jax.random.normal(ks[5], (out_channels, Ci, 3, 3), jnp.float32),
        "g2":  1.0 + 0.1 * jax.random.normal(ks[6], (out_channels,), jnp.float32),
        "b2":  0.1 * jax.random.normal(ks[7], (out_channels,), jnp.float32),
    }
    return raw


def pack_params(raw, N, H, W):
    """Host-side (numpy) repack of PyTorch-layout weights into the constant
    matrices used by the fused kernel (0/1 interleave / row-shift selectors and
    block-sparse conv matrices).  Specialized to the given (N, H, W)."""
    wt4 = np.asarray(raw["wt4"], np.float32)   # (Cin, Ch, 2, 2)
    bt = np.asarray(raw["bt"], np.float32)
    w1 = np.asarray(raw["w1"], np.float32)     # (Ci, Cin, 3, 3)
    w2 = np.asarray(raw["w2"], np.float32)     # (Cout, Ci, 3, 3)
    Cin, Ch = wt4.shape[0], wt4.shape[1]
    Ci, Cout = w1.shape[0], w2.shape[0]
    H2, W2 = 2 * H, 2 * W
    NH, NH2 = N * H, N * H2

    # ConvTranspose taps: per output-row-parity matrix, input lane (w*Cin + ci)
    # -> output lane ((2w+dx)*Ch + co).
    wt_dy = np.zeros((2, W * Cin, W2 * Ch), np.float32)
    for dy in range(2):
        for dx in range(2):
            for w in range(W):
                xo = 2 * w + dx
                wt_dy[dy, w * Cin:(w + 1) * Cin, xo * Ch:(xo + 1) * Ch] = wt4[:, :, dy, dx]

    # Row-parity interleave: up_row[2g + dy] <- a_dy[g].
    p_dy = np.zeros((2, NH2, NH), np.float32)
    for dy in range(2):
        for g in range(NH):
            p_dy[dy, 2 * g + dy, g] = 1.0

    # Vertical shift-by-(dy-1) selectors; out-of-image rows (zero padding) stay 0.
    s_dy = np.zeros((3, NH2, NH2), np.float32)
    for dy in range(3):
        for r in range(NH2):
            yin = r % H2 + dy - 1
            if 0 <= yin < H2:
                s_dy[dy, r, r + dy - 1] = 1.0

    # Conv1: rows indexed (ky, part[skip|up], x_in, c_in), cols (x, c_out).
    # Horizontal zero padding is absorbed by dropping out-of-range x_in.
    lane1 = W2 * Cin
    w1_big = np.zeros((3 * lane1, W2 * Ci), np.float32)
    for ky in range(3):
        for kx in range(3):
            for x in range(W2):
                xin = x + kx - 1
                if not 0 <= xin < W2:
                    continue
                for part in range(2):     # 0 = skip channels, 1 = upsampled channels
                    r0 = ky * lane1 + part * (W2 * Ch) + xin * Ch
                    w1_big[r0:r0 + Ch, x * Ci:(x + 1) * Ci] = \
                        w1[:, part * Ch:(part + 1) * Ch, ky, kx].T

    # Conv2: rows (ky, x_in, c_in), cols (x, c_out).
    lane2 = W2 * Ci
    w2_big = np.zeros((3 * lane2, W2 * Cout), np.float32)
    for ky in range(3):
        for kx in range(3):
            for x in range(W2):
                xin = x + kx - 1
                if not 0 <= xin < W2:
                    continue
                r0 = ky * lane2 + xin * Ci
                w2_big[r0:r0 + Ci, x * Cout:(x + 1) * Cout] = w2[:, :, ky, kx].T

    # Wide-lane <-> per-channel BN group selector: B[k, j] = [k % C == j % C].
    def chan_sel(C, lanes):
        idx = np.arange(lanes) % C
        return (idx[:, None] == idx[None, :]).astype(np.float32)

    bf16, f32 = jnp.bfloat16, jnp.float32
    return {
        "wt0": jnp.asarray(wt_dy[0], bf16), "wt1": jnp.asarray(wt_dy[1], bf16),
        "btw": jnp.asarray(np.tile(bt, W2)[None, :], f32),
        "p0": jnp.asarray(p_dy[0], f32), "p1": jnp.asarray(p_dy[1], f32),
        "s0": jnp.asarray(s_dy[0], bf16), "s1": jnp.asarray(s_dy[1], bf16),
        "s2": jnp.asarray(s_dy[2], bf16),
        "w1b": jnp.asarray(w1_big, bf16),
        "g1w": jnp.asarray(np.tile(np.asarray(raw["g1"], np.float32), W2)[None, :], f32),
        "b1w": jnp.asarray(np.tile(np.asarray(raw["b1"], np.float32), W2)[None, :], f32),
        "bsel1": jnp.asarray(chan_sel(Ci, W2 * Ci), f32),
        "w2b": jnp.asarray(w2_big, bf16),
        "g2w": jnp.asarray(np.tile(np.asarray(raw["g2"], np.float32), W2)[None, :], f32),
        "b2w": jnp.asarray(np.tile(np.asarray(raw["b2"], np.float32), W2)[None, :], f32),
        "bsel2": jnp.asarray(chan_sel(Cout, W2 * Cout), f32),
    }


# --------------------------- plain-JAX reference ------------------------------

def reference_forward(raw, x_copy_nchw, x_nchw):
    taps = jnp.einsum("nchw,cokl->nohwkl", x_nchw, raw["wt4"])
    N, Co, H, W, _, _ = taps.shape
    up = jnp.transpose(taps, (0, 1, 2, 4, 3, 5)).reshape(N, Co, 2 * H, 2 * W)
    up = up + raw["bt"][None, :, None, None]
    cat = jnp.concatenate([x_copy_nchw, up], axis=1)

    def cbr(x, w, g, b):
        y = lax.conv_general_dilated(x, w, (1, 1), ((1, 1), (1, 1)),
                                     dimension_numbers=("NCHW", "OIHW", "NCHW"))
        mean = jnp.mean(y, axis=(0, 2, 3), keepdims=True)
        var = jnp.mean((y - mean) ** 2, axis=(0, 2, 3), keepdims=True)
        y = (y - mean) * lax.rsqrt(var + BN_EPS)
        y = y * g[None, :, None, None] + b[None, :, None, None]
        return jnp.maximum(y, 0.0)

    h = cbr(cat, raw["w1"], raw["g1"], raw["b1"])
    return cbr(h, raw["w2"], raw["g2"], raw["b2"])


# --------------------------- main ---------------------------------------------

if __name__ == "__main__":
    in_channels, out_channels = 8, 8
    N, H, W = 2, 8, 8                       # deep-feature spatial size
    key = jax.random.PRNGKey(0)
    k_x, k_xc, k_p = jax.random.split(key, 3)

    # PyTorch-convention NCHW inputs.
    x = jax.random.normal(k_x, (N, in_channels, H, W), jnp.float32)                     # (2, 8, 8, 8)
    x_copy = jax.random.normal(k_xc, (N, in_channels // 2, 2 * H, 2 * W), jnp.float32)  # (2, 4, 16, 16)

    raw = init_params(k_p, in_channels, out_channels)
    kp = pack_params(raw, N, H, W)

    out = jax.block_until_ready(unet_decoder_forward(kp, x_copy, x))
    assert out.shape == (N, out_channels, 2 * H, 2 * W), out.shape

    ref = jax.block_until_ready(reference_forward(raw, x_copy, x))
    # bf16 MXU operands (f32 accumulation / f32 BN stats) -> compare against the
    # full-f32 reference with a correspondingly relaxed tolerance.
    if not jnp.allclose(out, ref, atol=2e-2, rtol=2e-2):
        err = float(jnp.max(jnp.abs(out - ref)))
        raise AssertionError(f"Pallas output does not match reference (max |diff| = {err})")
    print("KERNEL_OK")
</pallas_src>

<mosaic_0001>
module attributes {stable_mosaic.version = 11 : i64} {
  func.func @_decoder_kernel(%arg0: i32, %arg1: memref<16x64xbf16, #tpu.memory_space<vmem>>, %arg2: memref<32x64xbf16, #tpu.memory_space<vmem>>, %arg3: memref<64x64xbf16, #tpu.memory_space<vmem>>, %arg4: memref<64x64xbf16, #tpu.memory_space<vmem>>, %arg5: memref<1x64xf32, #tpu.memory_space<vmem>>, %arg6: memref<32x16xf32, #tpu.memory_space<vmem>>, %arg7: memref<32x16xf32, #tpu.memory_space<vmem>>, %arg8: memref<32x32xbf16, #tpu.memory_space<vmem>>, %arg9: memref<32x32xbf16, #tpu.memory_space<vmem>>, %arg10: memref<32x32xbf16, #tpu.memory_space<vmem>>, %arg11: memref<384x64xbf16, #tpu.memory_space<vmem>>, %arg12: memref<1x64xf32, #tpu.memory_space<vmem>>, %arg13: memref<1x64xf32, #tpu.memory_space<vmem>>, %arg14: memref<64x64xf32, #tpu.memory_space<vmem>>, %arg15: memref<192x128xbf16, #tpu.memory_space<vmem>>, %arg16: memref<1x128xf32, #tpu.memory_space<vmem>>, %arg17: memref<1x128xf32, #tpu.memory_space<vmem>>, %arg18: memref<128x128xf32, #tpu.memory_space<vmem>>, %arg19: memref<32x128xf32, #tpu.memory_space<vmem>>) attributes {dimension_semantics = [#tpu.dimension_semantics<arbitrary>], iteration_bounds = array<i64: 1>, scalar_prefetch = 0 : i64, scratch_operands = 0 : i64, tpu.core_type = #tpu.core_type<tc>, window_params = [{pipeline_mode = #tpu.pipeline_mode<synchronous>, transform_indices = @transform_0, window_bounds = array<i64: 16, 64>}, {pipeline_mode = #tpu.pipeline_mode<synchronous>, transform_indices = @transform_1, window_bounds = array<i64: 32, 64>}, {pipeline_mode = #tpu.pipeline_mode<synchronous>, transform_indices = @transform_2, window_bounds = array<i64: 64, 64>}, {pipeline_mode = #tpu.pipeline_mode<synchronous>, transform_indices = @transform_3, window_bounds = array<i64: 64, 64>}, {pipeline_mode = #tpu.pipeline_mode<synchronous>, transform_indices = @transform_4, window_bounds = array<i64: 1, 64>}, {pipeline_mode = #tpu.pipeline_mode<synchronous>, transform_indices = @transform_5, window_bounds = array<i64: 32, 16>}, {pipeline_mode = #tpu.pipeline_mode<synchronous>, transform_indices = @transform_6, window_bounds = array<i64: 32, 16>}, {pipeline_mode = #tpu.pipeline_mode<synchronous>, transform_indices = @transform_7, window_bounds = array<i64: 32, 32>}, {pipeline_mode = #tpu.pipeline_mode<synchronous>, transform_indices = @transform_8, window_bounds = array<i64: 32, 32>}, {pipeline_mode = #tpu.pipeline_mode<synchronous>, transform_indices = @transform_9, window_bounds = array<i64: 32, 32>}, {pipeline_mode = #tpu.pipeline_mode<synchronous>, transform_indices = @transform_10, window_bounds = array<i64: 384, 64>}, {pipeline_mode = #tpu.pipeline_mode<synchronous>, transform_indices = @transform_11, window_bounds = array<i64: 1, 64>}, {pipeline_mode = #tpu.pipeline_mode<synchronous>, transform_indices = @transform_12, window_bounds = array<i64: 1, 64>}, {pipeline_mode = #tpu.pipeline_mode<synchronous>, transform_indices = @transform_13, window_bounds = array<i64: 64, 64>}, {pipeline_mode = #tpu.pipeline_mode<synchronous>, transform_indices = @transform_14, window_bounds = array<i64: 192, 128>}, {pipeline_mode = #tpu.pipeline_mode<synchronous>, transform_indices = @transform_15, window_bounds = array<i64: 1, 128>}, {pipeline_mode = #tpu.pipeline_mode<synchronous>, transform_indices = @transform_16, window_bounds = array<i64: 1, 128>}, {pipeline_mode = #tpu.pipeline_mode<synchronous>, transform_indices = @transform_17, window_bounds = array<i64: 128, 128>}, {pipeline_mode = #tpu.pipeline_mode<synchronous>, transform_indices = @transform_18, window_bounds = array<i64: 32, 128>}]} {
    %c0 = arith.constant 0 : index
    %c0_0 = arith.constant 0 : index
    %0 = vector.load %arg1[%c0, %c0_0] : memref<16x64xbf16, #tpu.memory_space<vmem>>, vector<16x64xbf16>
    %c0_1 = arith.constant 0 : index
    %c0_2 = arith.constant 0 : index
    %1 = vector.load %arg3[%c0_1, %c0_2] : memref<64x64xbf16, #tpu.memory_space<vmem>>, vector<64x64xbf16>
    %cst = arith.constant dense<0.000000e+00> : vector<16x64xf32>
    %2 = tpu.matmul %0, %1, %cst {dimension_numbers = #tpu.dot_dimension_numbers<[1], [0], [0], [1], [0, 0, 1, 1], [], []>} : vector<16x64xbf16>, vector<64x64xbf16>, vector<16x64xf32> -> vector<16x64xf32>
    %c0_3 = arith.constant 0 : index
    %c0_4 = arith.constant 0 : index
    %3 = vector.load %arg4[%c0_3, %c0_4] : memref<64x64xbf16, #tpu.memory_space<vmem>>, vector<64x64xbf16>
    %cst_5 = arith.constant dense<0.000000e+00> : vector<16x64xf32>
    %4 = tpu.matmul %0, %3, %cst_5 {dimension_numbers = #tpu.dot_dimension_numbers<[1], [0], [0], [1], [0, 0, 1, 1], [], []>} : vector<16x64xbf16>, vector<64x64xbf16>, vector<16x64xf32> -> vector<16x64xf32>
    %c0_6 = arith.constant 0 : index
    %c0_7 = arith.constant 0 : index
    %5 = vector.load %arg6[%c0_6, %c0_7] : memref<32x16xf32, #tpu.memory_space<vmem>>, vector<32x16xf32>
    %cst_8 = arith.constant dense<0.000000e+00> : vector<32x64xf32>
    %6 = tpu.matmul %5, %2, %cst_8 {dimension_numbers = #tpu.dot_dimension_numbers<[1], [0], [0], [1], [0, 0, 1, 1], [], []>} : vector<32x16xf32>, vector<16x64xf32>, vector<32x64xf32> -> vector<32x64xf32>
    %c0_9 = arith.constant 0 : index
    %c0_10 = arith.constant 0 : index
    %7 = vector.load %arg7[%c0_9, %c0_10] : memref<32x16xf32, #tpu.memory_space<vmem>>, vector<32x16xf32>
    %cst_11 = arith.constant dense<0.000000e+00> : vector<32x64xf32>
    %8 = tpu.matmul %7, %4, %cst_11 {dimension_numbers = #tpu.dot_dimension_numbers<[1], [0], [0], [1], [0, 0, 1, 1], [], []>} : vector<32x16xf32>, vector<16x64xf32>, vector<32x64xf32> -> vector<32x64xf32>
    %9 = arith.addf %6, %8 : vector<32x64xf32>
    %c0_12 = arith.constant 0 : index
    %c0_13 = arith.constant 0 : index
    %10 = vector.load %arg5[%c0_12, %c0_13] : memref<1x64xf32, #tpu.memory_space<vmem>>, vector<1x64xf32>
    %11 = vector.broadcast %10 : vector<1x64xf32> to vector<32x64xf32>
    %12 = arith.addf %9, %11 : vector<32x64xf32>
    %c0_14 = arith.constant 0 : index
    %c0_15 = arith.constant 0 : index
    %13 = vector.load %arg2[%c0_14, %c0_15] : memref<32x64xbf16, #tpu.memory_space<vmem>>, vector<32x64xbf16>
    %14 = arith.truncf %12 : vector<32x64xf32> to vector<32x64xbf16>
    %15 = tpu.concatenate %13, %14 in 1 : vector<32x64xbf16>, vector<32x64xbf16> -> vector<32x128xbf16>
    %c0_16 = arith.constant 0 : index
    %c0_17 = arith.constant 0 : index
    %16 = vector.load %arg8[%c0_16, %c0_17] : memref<32x32xbf16, #tpu.memory_space<vmem>>, vector<32x32xbf16>
    %cst_18 = arith.constant dense<0.000000e+00> : vector<32x128xf32>
    %17 = tpu.matmul %16, %15, %cst_18 {dimension_numbers = #tpu.dot_dimension_numbers<[1], [0], [0], [1], [0, 0, 1, 1], [], []>} : vector<32x32xbf16>, vector<32x128xbf16>, vector<32x128xf32> -> vector<32x128xf32>
    %18 = arith.truncf %17 : vector<32x128xf32> to vector<32x128xbf16>
    %c0_19 = arith.constant 0 : index
    %c0_20 = arith.constant 0 : index
    %19 = vector.load %arg9[%c0_19, %c0_20] : memref<32x32xbf16, #tpu.memory_space<vmem>>, vector<32x32xbf16>
    %cst_21 = arith.constant dense<0.000000e+00> : vector<32x128xf32>
    %20 = tpu.matmul %19, %15, %cst_21 {dimension_numbers = #tpu.dot_dimension_numbers<[1], [0], [0], [1], [0, 0, 1, 1], [], []>} : vector<32x32xbf16>, vector<32x128xbf16>, vector<32x128xf32> -> vector<32x128xf32>
    %21 = arith.truncf %20 : vector<32x128xf32> to vector<32x128xbf16>
    %c0_22 = arith.constant 0 : index
    %c0_23 = arith.constant 0 : index
    %22 = vector.load %arg10[%c0_22, %c0_23] : memref<32x32xbf16, #tpu.memory_space<vmem>>, vector<32x32xbf16>
    %cst_24 = arith.constant dense<0.000000e+00> : vector<32x128xf32>
    %23 = tpu.matmul %22, %15, %cst_24 {dimension_numbers = #tpu.dot_dimension_numbers<[1], [0], [0], [1], [0, 0, 1, 1], [], []>} : vector<32x32xbf16>, vector<32x128xbf16>, vector<32x128xf32> -> vector<32x128xf32>
    %24 = arith.truncf %23 : vector<32x128xf32> to vector<32x128xbf16>
    %25 = tpu.concatenate %18, %21, %24 in 1 : vector<32x128xbf16>, vector<32x128xbf16>, vector<32x128xbf16> -> vector<32x384xbf16>
    %c0_25 = arith.constant 0 : index
    %c0_26 = arith.constant 0 : index
    %26 = vector.load %arg11[%c0_25, %c0_26] : memref<384x64xbf16, #tpu.memory_space<vmem>>, vector<384x64xbf16>
    %cst_27 = arith.constant dense<0.000000e+00> : vector<32x64xf32>
    %27 = tpu.matmul %25, %26, %cst_27 {dimension_numbers = #tpu.dot_dimension_numbers<[1], [0], [0], [1], [0, 0, 1, 1], [], []>} : vector<32x384xbf16>, vector<384x64xbf16>, vector<32x64xf32> -> vector<32x64xf32>
    %cst_28 = arith.constant dense<0.000000e+00> : vector<64xf32>
    %28 = vector.multi_reduction <add>, %27, %cst_28 [0] : vector<32x64xf32> to vector<64xf32>
    %29 = vector.shape_cast %28 : vector<64xf32> to vector<1x64xf32>
    %30 = arith.mulf %27, %27 : vector<32x64xf32>
    %cst_29 = arith.constant dense<0.000000e+00> : vector<64xf32>
    %31 = vector.multi_reduction <add>, %30, %cst_29 [0] : vector<32x64xf32> to vector<64xf32>
    %32 = vector.shape_cast %31 : vector<64xf32> to vector<1x64xf32>
    %c0_30 = arith.constant 0 : index
    %c0_31 = arith.constant 0 : index
    %33 = vector.load %arg14[%c0_30, %c0_31] : memref<64x64xf32, #tpu.memory_space<vmem>>, vector<64x64xf32>
    %cst_32 = arith.constant dense<0.000000e+00> : vector<1x64xf32>
    %34 = tpu.matmul %29, %33, %cst_32 {dimension_numbers = #tpu.dot_dimension_numbers<[1], [0], [0], [1], [0, 0, 1, 1], [], []>} : vector<1x64xf32>, vector<64x64xf32>, vector<1x64xf32> -> vector<1x64xf32>
    %cst_33 = arith.constant 0.001953125 : f32
    %35 = vector.broadcast %cst_33 : f32 to vector<1x64xf32>
    %36 = arith.mulf %34, %35 : vector<1x64xf32>
    %c0_34 = arith.constant 0 : index
    %c0_35 = arith.constant 0 : index
    %37 = vector.load %arg14[%c0_34, %c0_35] : memref<64x64xf32, #tpu.memory_space<vmem>>, vector<64x64xf32>
    %cst_36 = arith.constant dense<0.000000e+00> : vector<1x64xf32>
    %38 = tpu.matmul %32, %37, %cst_36 {dimension_numbers = #tpu.dot_dimension_numbers<[1], [0], [0], [1], [0, 0, 1, 1], [], []>} : vector<1x64xf32>, vector<64x64xf32>, vector<1x64xf32> -> vector<1x64xf32>
    %cst_37 = arith.constant 0.001953125 : f32
    %39 = vector.broadcast %cst_37 : f32 to vector<1x64xf32>
    %40 = arith.mulf %38, %39 : vector<1x64xf32>
    %41 = arith.mulf %36, %36 : vector<1x64xf32>
    %42 = arith.subf %40, %41 : vector<1x64xf32>
    %cst_38 = arith.constant 9.99999974E-6 : f32
    %43 = vector.broadcast %cst_38 : f32 to vector<1x64xf32>
    %44 = arith.addf %42, %43 : vector<1x64xf32>
    %45 = math.rsqrt %44 : vector<1x64xf32>
    %c0_39 = arith.constant 0 : index
    %c0_40 = arith.constant 0 : index
    %46 = vector.load %arg12[%c0_39, %c0_40] : memref<1x64xf32, #tpu.memory_space<vmem>>, vector<1x64xf32>
    %47 = arith.mulf %46, %45 : vector<1x64xf32>
    %c0_41 = arith.constant 0 : index
    %c0_42 = arith.constant 0 : index
    %48 = vector.load %arg13[%c0_41, %c0_42] : memref<1x64xf32, #tpu.memory_space<vmem>>, vector<1x64xf32>
    %49 = arith.mulf %36, %47 : vector<1x64xf32>
    %50 = arith.subf %48, %49 : vector<1x64xf32>
    %51 = vector.broadcast %47 : vector<1x64xf32> to vector<32x64xf32>
    %52 = arith.mulf %27, %51 : vector<32x64xf32>
    %53 = vector.broadcast %50 : vector<1x64xf32> to vector<32x64xf32>
    %54 = arith.addf %52, %53 : vector<32x64xf32>
    %cst_43 = arith.constant 0.000000e+00 : f32
    %55 = vector.broadcast %cst_43 : f32 to vector<32x64xf32>
    %56 = arith.maximumf %54, %55 : vector<32x64xf32>
    %57 = arith.truncf %56 : vector<32x64xf32> to vector<32x64xbf16>
    %c0_44 = arith.constant 0 : index
    %c0_45 = arith.constant 0 : index
    %58 = vector.load %arg8[%c0_44, %c0_45] : memref<32x32xbf16, #tpu.memory_space<vmem>>, vector<32x32xbf16>
    %cst_46 = arith.constant dense<0.000000e+00> : vector<32x64xf32>
    %59 = tpu.matmul %58, %57, %cst_46 {dimension_numbers = #tpu.dot_dimension_numbers<[1], [0], [0], [1], [0, 0, 1, 1], [], []>} : vector<32x32xbf16>, vector<32x64xbf16>, vector<32x64xf32> -> vector<32x64xf32>
    %60 = arith.truncf %59 : vector<32x64xf32> to vector<32x64xbf16>
    %c0_47 = arith.constant 0 : index
    %c0_48 = arith.constant 0 : index
    %61 = vector.load %arg9[%c0_47, %c0_48] : memref<32x32xbf16, #tpu.memory_space<vmem>>, vector<32x32xbf16>
    %cst_49 = arith.constant dense<0.000000e+00> : vector<32x64xf32>
    %62 = tpu.matmul %61, %57, %cst_49 {dimension_numbers = #tpu.dot_dimension_numbers<[1], [0], [0], [1], [0, 0, 1, 1], [], []>} : vector<32x32xbf16>, vector<32x64xbf16>, vector<32x64xf32> -> vector<32x64xf32>
    %63 = arith.truncf %62 : vector<32x64xf32> to vector<32x64xbf16>
    %c0_50 = arith.constant 0 : index
    %c0_51 = arith.constant 0 : index
    %64 = vector.load %arg10[%c0_50, %c0_51] : memref<32x32xbf16, #tpu.memory_space<vmem>>, vector<32x32xbf16>
    %cst_52 = arith.constant dense<0.000000e+00> : vector<32x64xf32>
    %65 = tpu.matmul %64, %57, %cst_52 {dimension_numbers = #tpu.dot_dimension_numbers<[1], [0], [0], [1], [0, 0, 1, 1], [], []>} : vector<32x32xbf16>, vector<32x64xbf16>, vector<32x64xf32> -> vector<32x64xf32>
    %66 = arith.truncf %65 : vector<32x64xf32> to vector<32x64xbf16>
    %67 = tpu.concatenate %60, %63, %66 in 1 : vector<32x64xbf16>, vector<32x64xbf16>, vector<32x64xbf16> -> vector<32x192xbf16>
    %c0_53 = arith.constant 0 : index
    %c0_54 = arith.constant 0 : index
    %68 = vector.load %arg15[%c0_53, %c0_54] : memref<192x128xbf16, #tpu.memory_space<vmem>>, vector<192x128xbf16>
    %cst_55 = arith.constant dense<0.000000e+00> : vector<32x128xf32>
    %69 = tpu.matmul %67, %68, %cst_55 {dimension_numbers = #tpu.dot_dimension_numbers<[1], [0], [0], [1], [0, 0, 1, 1], [], []>} : vector<32x192xbf16>, vector<192x128xbf16>, vector<32x128xf32> -> vector<32x128xf32>
    %cst_56 = arith.constant dense<0.000000e+00> : vector<128xf32>
    %70 = vector.multi_reduction <add>, %69, %cst_56 [0] : vector<32x128xf32> to vector<128xf32>
    %71 = vector.shape_cast %70 : vector<128xf32> to vector<1x128xf32>
    %72 = arith.mulf %69, %69 : vector<32x128xf32>
    %cst_57 = arith.constant dense<0.000000e+00> : vector<128xf32>
    %73 = vector.multi_reduction <add>, %72, %cst_57 [0] : vector<32x128xf32> to vector<128xf32>
    %74 = vector.shape_cast %73 : vector<128xf32> to vector<1x128xf32>
    %c0_58 = arith.constant 0 : index
    %c0_59 = arith.constant 0 : index
    %75 = vector.load %arg18[%c0_58, %c0_59] : memref<128x128xf32, #tpu.memory_space<vmem>>, vector<128x128xf32>
    %cst_60 = arith.constant dense<0.000000e+00> : vector<1x128xf32>
    %76 = tpu.matmul %71, %75, %cst_60 {dimension_numbers = #tpu.dot_dimension_numbers<[1], [0], [0], [1], [0, 0, 1, 1], [], []>} : vector<1x128xf32>, vector<128x128xf32>, vector<1x128xf32> -> vector<1x128xf32>
    %cst_61 = arith.constant 0.001953125 : f32
    %77 = vector.broadcast %cst_61 : f32 to vector<1x128xf32>
    %78 = arith.mulf %76, %77 : vector<1x128xf32>
    %c0_62 = arith.constant 0 : index
    %c0_63 = arith.constant 0 : index
    %79 = vector.load %arg18[%c0_62, %c0_63] : memref<128x128xf32, #tpu.memory_space<vmem>>, vector<128x128xf32>
    %cst_64 = arith.constant dense<0.000000e+00> : vector<1x128xf32>
    %80 = tpu.matmul %74, %79, %cst_64 {dimension_numbers = #tpu.dot_dimension_numbers<[1], [0], [0], [1], [0, 0, 1, 1], [], []>} : vector<1x128xf32>, vector<128x128xf32>, vector<1x128xf32> -> vector<1x128xf32>
    %cst_65 = arith.constant 0.001953125 : f32
    %81 = vector.broadcast %cst_65 : f32 to vector<1x128xf32>
    %82 = arith.mulf %80, %81 : vector<1x128xf32>
    %83 = arith.mulf %78, %78 : vector<1x128xf32>
    %84 = arith.subf %82, %83 : vector<1x128xf32>
    %cst_66 = arith.constant 9.99999974E-6 : f32
    %85 = vector.broadcast %cst_66 : f32 to vector<1x128xf32>
    %86 = arith.addf %84, %85 : vector<1x128xf32>
    %87 = math.rsqrt %86 : vector<1x128xf32>
    %c0_67 = arith.constant 0 : index
    %c0_68 = arith.constant 0 : index
    %88 = vector.load %arg16[%c0_67, %c0_68] : memref<1x128xf32, #tpu.memory_space<vmem>>, vector<1x128xf32>
    %89 = arith.mulf %88, %87 : vector<1x128xf32>
    %c0_69 = arith.constant 0 : index
    %c0_70 = arith.constant 0 : index
    %90 = vector.load %arg17[%c0_69, %c0_70] : memref<1x128xf32, #tpu.memory_space<vmem>>, vector<1x128xf32>
    %91 = arith.mulf %78, %89 : vector<1x128xf32>
    %92 = arith.subf %90, %91 : vector<1x128xf32>
    %93 = vector.broadcast %89 : vector<1x128xf32> to vector<32x128xf32>
    %94 = arith.mulf %69, %93 : vector<32x128xf32>
    %95 = vector.broadcast %92 : vector<1x128xf32> to vector<32x128xf32>
    %96 = arith.addf %94, %95 : vector<32x128xf32>
    %cst_71 = arith.constant 0.000000e+00 : f32
    %97 = vector.broadcast %cst_71 : f32 to vector<32x128xf32>
    %98 = arith.maximumf %96, %97 : vector<32x128xf32>
    %c0_72 = arith.constant 0 : index
    %c0_73 = arith.constant 0 : index
    %99 = vector.load %arg19[%c0_72, %c0_73] : memref<32x128xf32, #tpu.memory_space<vmem>>, vector<32x128xf32>
    tpu.vector_store %arg19[%c0_72, %c0_73], %98 {strides = array<i32>} : memref<32x128xf32, #tpu.memory_space<vmem>>, vector<32x128xf32>,
    return
  }
  func.func @transform_0(%arg0: i32) -> (i32, i32) {
    %c0_i32 = arith.constant 0 : i32
    %c0_i32_0 = arith.constant 0 : i32
    %c0_i32_1 = arith.constant 0 : i32
    return %c0_i32, %c0_i32_0 : i32, i32
  }
  func.func @transform_1(%arg0: i32) -> (i32, i32) {
    %c0_i32 = arith.constant 0 : i32
    %c0_i32_0 = arith.constant 0 : i32
    %c0_i32_1 = arith.constant 0 : i32
    return %c0_i32, %c0_i32_0 : i32, i32
  }
  func.func @transform_2(%arg0: i32) -> (i32, i32) {
    %c0_i32 = arith.constant 0 : i32
    %c0_i32_0 = arith.constant 0 : i32
    %c0_i32_1 = arith.constant 0 : i32
    return %c0_i32, %c0_i32_0 : i32, i32
  }
  func.func @transform_3(%arg0: i32) -> (i32, i32) {
    %c0_i32 = arith.constant 0 : i32
    %c0_i32_0 = arith.constant 0 : i32
    %c0_i32_1 = arith.constant 0 : i32
    return %c0_i32, %c0_i32_0 : i32, i32
  }
  func.func @transform_4(%arg0: i32) -> (i32, i32) {
    %c0_i32 = arith.constant 0 : i32
    %c0_i32_0 = arith.constant 0 : i32
    %c0_i32_1 = arith.constant 0 : i32
    return %c0_i32, %c0_i32_0 : i32, i32
  }
  func.func @transform_5(%arg0: i32) -> (i32, i32) {
    %c0_i32 = arith.constant 0 : i32
    %c0_i32_0 = arith.constant 0 : i32
    %c0_i32_1 = arith.constant 0 : i32
    return %c0_i32, %c0_i32_0 : i32, i32
  }
  func.func @transform_6(%arg0: i32) -> (i32, i32) {
    %c0_i32 = arith.constant 0 : i32
    %c0_i32_0 = arith.constant 0 : i32
    %c0_i32_1 = arith.constant 0 : i32
    return %c0_i32, %c0_i32_0 : i32, i32
  }
  func.func @transform_7(%arg0: i32) -> (i32, i32) {
    %c0_i32 = arith.constant 0 : i32
    %c0_i32_0 = arith.constant 0 : i32
    %c0_i32_1 = arith.constant 0 : i32
    return %c0_i32, %c0_i32_0 : i32, i32
  }
  func.func @transform_8(%arg0: i32) -> (i32, i32) {
    %c0_i32 = arith.constant 0 : i32
    %c0_i32_0 = arith.constant 0 : i32
    %c0_i32_1 = arith.constant 0 : i32
    return %c0_i32, %c0_i32_0 : i32, i32
  }
  func.func @transform_9(%arg0: i32) -> (i32, i32) {
    %c0_i32 = arith.constant 0 : i32
    %c0_i32_0 = arith.constant 0 : i32
    %c0_i32_1 = arith.constant 0 : i32
    return %c0_i32, %c0_i32_0 : i32, i32
  }
  func.func @transform_10(%arg0: i32) -> (i32, i32) {
    %c0_i32 = arith.constant 0 : i32
    %c0_i32_0 = arith.constant 0 : i32
    %c0_i32_1 = arith.constant 0 : i32
    return %c0_i32, %c0_i32_0 : i32, i32
  }
  func.func @transform_11(%arg0: i32) -> (i32, i32) {
    %c0_i32 = arith.constant 0 : i32
    %c0_i32_0 = arith.constant 0 : i32
    %c0_i32_1 = arith.constant 0 : i32
    return %c0_i32, %c0_i32_0 : i32, i32
  }
  func.func @transform_12(%arg0: i32) -> (i32, i32) {
    %c0_i32 = arith.constant 0 : i32
    %c0_i32_0 = arith.constant 0 : i32
    %c0_i32_1 = arith.constant 0 : i32
    return %c0_i32, %c0_i32_0 : i32, i32
  }
  func.func @transform_13(%arg0: i32) -> (i32, i32) {
    %c0_i32 = arith.constant 0 : i32
    %c0_i32_0 = arith.constant 0 : i32
    %c0_i32_1 = arith.constant 0 : i32
    return %c0_i32, %c0_i32_0 : i32, i32
  }
  func.func @transform_14(%arg0: i32) -> (i32, i32) {
    %c0_i32 = arith.constant 0 : i32
    %c0_i32_0 = arith.constant 0 : i32
    %c0_i32_1 = arith.constant 0 : i32
    return %c0_i32, %c0_i32_0 : i32, i32
  }
  func.func @transform_15(%arg0: i32) -> (i32, i32) {
    %c0_i32 = arith.constant 0 : i32
    %c0_i32_0 = arith.constant 0 : i32
    %c0_i32_1 = arith.constant 0 : i32
    return %c0_i32, %c0_i32_0 : i32, i32
  }
  func.func @transform_16(%arg0: i32) -> (i32, i32) {
    %c0_i32 = arith.constant 0 : i32
    %c0_i32_0 = arith.constant 0 : i32
    %c0_i32_1 = arith.constant 0 : i32
    return %c0_i32, %c0_i32_0 : i32, i32
  }
  func.func @transform_17(%arg0: i32) -> (i32, i32) {
    %c0_i32 = arith.constant 0 : i32
    %c0_i32_0 = arith.constant 0 : i32
    %c0_i32_1 = arith.constant 0 : i32
    return %c0_i32, %c0_i32_0 : i32, i32
  }
  func.func @transform_18(%arg0: i32) -> (i32, i32) {
    %c0_i32 = arith.constant 0 : i32
    %c0_i32_0 = arith.constant 0 : i32
    %c0_i32_1 = arith.constant 0 : i32
    return %c0_i32, %c0_i32_0 : i32, i32
  }
}

</mosaic_0001>

<llo_original>
// kernel: tpu_custom_call.1
$region0: #{tpu_custom_call.1}
  #allocation0 [shape = 'u32[]', space=smem, size = 0x4, offset = 0x4, fixed_abs, tag = 'smem constant byte address 0x4 - core index']
  #allocation1 [shape = 'u32[72,128]{1,0:T(1,128)}', space=vmem, size = 0x9000, scoped, tag = 'internal scratch']
  %s0 = inlined_call_operand.vmem [shape: bf16[16,64], index: 0, kind: input, shape index: {}]
  %s1 = inlined_call_operand.hbm [shape: bf16[32,64], index: 1, kind: input, shape index: {}]
  %s2 = inlined_call_operand.hbm [shape: bf16[64,64], index: 2, kind: input, shape index: {}]
  %s3 = inlined_call_operand.hbm [shape: bf16[64,64], index: 3, kind: input, shape index: {}]
  %s4 = inlined_call_operand.vmem [shape: f32[1,64], index: 4, kind: input, shape index: {}]
  %s5 = inlined_call_operand.vmem [shape: f32[32,16], index: 5, kind: input, shape index: {}]
  %s6 = inlined_call_operand.vmem [shape: f32[32,16], index: 6, kind: input, shape index: {}]
  %s7 = inlined_call_operand.hbm [shape: bf16[32,32], index: 7, kind: input, shape index: {}]
  %s8 = inlined_call_operand.hbm [shape: bf16[32,32], index: 8, kind: input, shape index: {}]
  %s9 = inlined_call_operand.hbm [shape: bf16[32,32], index: 9, kind: input, shape index: {}]
  %s10 = inlined_call_operand.vmem [shape: bf16[384,64], index: 10, kind: input, shape index: {}]
  %s11 = inlined_call_operand.hbm [shape: f32[1,64], index: 11, kind: input, shape index: {}]
  %s12 = inlined_call_operand.hbm [shape: f32[1,64], index: 12, kind: input, shape index: {}]
  %s13 = inlined_call_operand.vmem [shape: f32[64,64], index: 13, kind: input, shape index: {}]
  %s14 = inlined_call_operand.vmem [shape: bf16[192,128], index: 14, kind: input, shape index: {}]
  %s15 = inlined_call_operand.vmem [shape: f32[1,128], index: 15, kind: input, shape index: {}]
  %s16 = inlined_call_operand.vmem [shape: f32[1,128], index: 16, kind: input, shape index: {}]
  %s17 = inlined_call_operand.vmem [shape: f32[128,128], index: 17, kind: input, shape index: {}]
  %s18 = inlined_call_operand.hbm [shape: f32[32,128], index: 18, kind: output, shape index: {}]
  %s19 = sld [smem:[#allocation0]]
  $region114: #{tpu_custom_call.1} parent=0
    _
  %s21 = ssub.s32 1, %s19
  %s22 = scalar_select 0, %s21, %s19
  $region1: #{tpu_custom_call.1} parent=0
    #allocation2 [shape = 'u8[8192]{0}', space=vmem, size = 0x2000, scoped, tag = 'input window, operand 1, single buffered']
    #allocation3 [shape = 's32[1]{0}', space=sflag, size = 0x4, scoped, tag = 'scoped memory for tpu_custom_call.1']
    #allocation4 [shape = 's32[1]{0}', space=sflag, size = 0x4, scoped, tag = 'scoped memory for tpu_custom_call.1']
    #allocation5 [shape = 'u8[16384]{0}', space=vmem, size = 0x4000, scoped, tag = 'input window, operand 2, single buffered']
    #allocation6 [shape = 's32[1]{0}', space=sflag, size = 0x4, scoped, tag = 'scoped memory for tpu_custom_call.1']
    #allocation7 [shape = 'u8[16384]{0}', space=vmem, size = 0x4000, scoped, tag = 'input window, operand 3, single buffered']
    #allocation8 [shape = 'u8[8192]{0}', space=vmem, size = 0x2000, scoped, tag = 'input window, operand 7, single buffered']
    #allocation9 [shape = 's32[1]{0}', space=sflag, size = 0x4, scoped, tag = 'scoped memory for tpu_custom_call.1']
    #allocation10 [shape = 'u8[8192]{0}', space=vmem, size = 0x2000, scoped, tag = 'input window, operand 8, single buffered']
    #allocation11 [shape = 'u8[8192]{0}', space=vmem, size = 0x2000, scoped, tag = 'input window, operand 9, single buffered']
    #allocation12 [shape = 's32[1]{0}', space=sflag, size = 0x4, scoped, tag = 'scoped memory for tpu_custom_call.1']
    #allocation13 [shape = 'u8[512]{0}', space=vmem, size = 0x400, scoped, tag = 'input window, operand 11, single buffered']
    #allocation14 [shape = 'u8[512]{0}', space=vmem, size = 0x400, scoped, tag = 'input window, operand 12, single buffered']
    #allocation15 [shape = 's32[1]{0}', space=sflag, size = 0x4, scoped, tag = 'scoped memory for tpu_custom_call.1']
    #allocation16 [shape = 'u8[16384]{0}', space=vmem, size = 0x4000, scoped, tag = 'output window, operand 0, single buffered']
    %23 = vsyncpa [#allocation3], 0
    %24 = vsyncpa [#allocation6], 0
    %25 = vsyncpa [#allocation9], 0
    %26 = vsyncpa [#allocation12], 0
    %27 = vsyncpa [#allocation15], 0
    %28 = vsyncpa [#allocation4], 0
    // Predicated region
    $region2: #{tpu_custom_call.1} parent=1 // pred_check
      _
    $region3: #{tpu_custom_call.1} parent=1 // pred_check_branch
      %30 = sbr.rel (0) target = $region5
    $region4: #{tpu_custom_call.1} parent=1 // pred_region
      _
    $region5: #{tpu_custom_call.1} parent=1 // pred_fallthru
      _
    // Predicated region
    $region6: #{tpu_custom_call.1} parent=1 // pred_check
      _
    $region7: #{tpu_custom_call.1} parent=1 // pred_check_branch
      %32 = sbr.rel (0) target = $region9
    $region8: #{tpu_custom_call.1} parent=1 // pred_region
      %34 = vsyncadd [#allocation3], 0
      %s35 = sshll.u32 %s1, 4
      %s36 = int_to_ptr.hbm [resolvable:$true] %s35
      %s37 = sshll.u32 [#allocation2], 4
      %s38 = int_to_ptr.vmem [resolvable:$true] %s37
      %43 = dma.hbm_to_vmem [thread:$0]  %s36, 256, %s38, [#allocation3], 64, 64, 4
    $region9: #{tpu_custom_call.1} parent=1 // pred_fallthru
      _
    // Predicated region
    $region10: #{tpu_custom_call.1} parent=1 // pred_check
      _
    $region11: #{tpu_custom_call.1} parent=1 // pred_check_branch
      %45 = sbr.rel (0) target = $region13
    $region12: #{tpu_custom_call.1} parent=1 // pred_region
      %47 = vsyncadd [#allocation6], 0
      %s48 = sshll.u32 %s2, 4
      %s49 = int_to_ptr.hbm [resolvable:$true] %s48
      %s50 = sshll.u32 [#allocation5], 4
      %s51 = int_to_ptr.vmem [resolvable:$true] %s50
      %56 = dma.hbm_to_vmem [thread:$0]  %s49, 512, %s51, [#allocation6], 64, 64, 4
    $region13: #{tpu_custom_call.1} parent=1 // pred_fallthru
      _
    // Predicated region
    $region14: #{tpu_custom_call.1} parent=1 // pred_check
      _
    $region15: #{tpu_custom_call.1} parent=1 // pred_check_branch
      %58 = sbr.rel (0) target = $region17
    $region16: #{tpu_custom_call.1} parent=1 // pred_region
      %60 = vsyncadd [#allocation6], 0
      %s61 = sshll.u32 %s3, 4
      %s62 = int_to_ptr.hbm [resolvable:$true] %s61
      %s63 = sshll.u32 [#allocation7], 4
      %s64 = int_to_ptr.vmem [resolvable:$true] %s63
      %69 = dma.hbm_to_vmem [thread:$0]  %s62, 512, %s64, [#allocation6], 64, 64, 4
    $region17: #{tpu_custom_call.1} parent=1 // pred_fallthru
      _
    // Predicated region
    $region18: #{tpu_custom_call.1} parent=1 // pred_check
      _
    $region19: #{tpu_custom_call.1} parent=1 // pred_check_branch
      %71 = sbr.rel (0) target = $region21
    $region20: #{tpu_custom_call.1} parent=1 // pred_region
      _
    $region21: #{tpu_custom_call.1} parent=1 // pred_fallthru
      _
    // Predicated region
    $region22: #{tpu_custom_call.1} parent=1 // pred_check
      _
    $region23: #{tpu_custom_call.1} parent=1 // pred_check_branch
      %73 = sbr.rel (0) target = $region25
    $region24: #{tpu_custom_call.1} parent=1 // pred_region
      _
    $region25: #{tpu_custom_call.1} parent=1 // pred_fallthru
      _
    // Predicated region
    $region26: #{tpu_custom_call.1} parent=1 // pred_check
      _
    $region27: #{tpu_custom_call.1} parent=1 // pred_check_branch
      %75 = sbr.rel (0) target = $region29
    $region28: #{tpu_custom_call.1} parent=1 // pred_region
      _
    $region29: #{tpu_custom_call.1} parent=1 // pred_fallthru
      _
    // Predicated region
    $region30: #{tpu_custom_call.1} parent=1 // pred_check
      _
    $region31: #{tpu_custom_call.1} parent=1 // pred_check_branch
      %77 = sbr.rel (0) target = $region33
    $region32: #{tpu_custom_call.1} parent=1 // pred_region
      %79 = vsyncadd [#allocation9], 0
      %s80 = sshll.u32 %s7, 4
      %s81 = int_to_ptr.hbm [resolvable:$true] %s80
      %s82 = sshll.u32 [#allocation8], 4
      %s83 = int_to_ptr.vmem [resolvable:$true] %s82
      %88 = dma.hbm_to_vmem [thread:$0]  %s81, 256, %s83, [#allocation9], 64, 64, 4
    $region33: #{tpu_custom_call.1} parent=1 // pred_fallthru
      _
    // Predicated region
    $region34: #{tpu_custom_call.1} parent=1 // pred_check
      _
    $region35: #{tpu_custom_call.1} parent=1 // pred_check_branch
      %90 = sbr.rel (0) target = $region37
    $region36: #{tpu_custom_call.1} parent=1 // pred_region
      %92 = vsyncadd [#allocation9], 0
      %s93 = sshll.u32 %s8, 4
      %s94 = int_to_ptr.hbm [resolvable:$true] %s93
      %s95 = sshll.u32 [#allocation10], 4
      %s96 = int_to_ptr.vmem [resolvable:$true] %s95
      %101 = dma.hbm_to_vmem [thread:$0]  %s94, 256, %s96, [#allocation9], 64, 64, 4
    $region37: #{tpu_custom_call.1} parent=1 // pred_fallthru
      _
    // Predicated region
    $region38: #{tpu_custom_call.1} parent=1 // pred_check
      _
    $region39: #{tpu_custom_call.1} parent=1 // pred_check_branch
      %103 = sbr.rel (0) target = $region41
    $region40: #{tpu_custom_call.1} parent=1 // pred_region
      %105 = vsyncadd [#allocation12], 0
      %s106 = sshll.u32 %s9, 4
      %s107 = int_to_ptr.hbm [resolvable:$true] %s106
      %s108 = sshll.u32 [#allocation11], 4
      %s109 = int_to_ptr.vmem [resolvable:$true] %s108
      %114 = dma.hbm_to_vmem [thread:$0]  %s107, 256, %s109, [#allocation12], 64, 64, 4
    $region41: #{tpu_custom_call.1} parent=1 // pred_fallthru
      _
    // Predicated region
    $region42: #{tpu_custom_call.1} parent=1 // pred_check
      _
    $region43: #{tpu_custom_call.1} parent=1 // pred_check_branch
      %116 = sbr.rel (0) target = $region45
    $region44: #{tpu_custom_call.1} parent=1 // pred_region
      _
    $region45: #{tpu_custom_call.1} parent=1 // pred_fallthru
      _
    // Predicated region
    $region46: #{tpu_custom_call.1} parent=1 // pred_check
      _
    $region47: #{tpu_custom_call.1} parent=1 // pred_check_branch
      %118 = sbr.rel (0) target = $region49
    $region48: #{tpu_custom_call.1} parent=1 // pred_region
      %120 = vsyncadd [#allocation12], 0
      %s122 = sshll.u32 %s11, 4
      %s123 = int_to_ptr.hbm [resolvable:$true] %s122
      %s124 = sshll.u32 [#allocation13], 4
      %s125 = int_to_ptr.vmem [resolvable:$true] %s124
      %127 = dma.hbm_to_vmem [thread:$0]  %s123, 16, %s125, [#allocation12]
    $region49: #{tpu_custom_call.1} parent=1 // pred_fallthru
      _
    // Predicated region
    $region50: #{tpu_custom_call.1} parent=1 // pred_check
      _
    $region51: #{tpu_custom_call.1} parent=1 // pred_check_branch
      %129 = sbr.rel (0) target = $region53
    $region52: #{tpu_custom_call.1} parent=1 // pred_region
      %131 = vsyncadd [#allocation15], 0
      %s133 = sshll.u32 %s12, 4
      %s134 = int_to_ptr.hbm [resolvable:$true] %s133
      %s135 = sshll.u32 [#allocation14], 4
      %s136 = int_to_ptr.vmem [resolvable:$true] %s135
      %138 = dma.hbm_to_vmem [thread:$0]  %s134, 16, %s136, [#allocation15]
    $region53: #{tpu_custom_call.1} parent=1 // pred_fallthru
      _
    // Predicated region
    $region54: #{tpu_custom_call.1} parent=1 // pred_check
      _
    $region55: #{tpu_custom_call.1} parent=1 // pred_check_branch
      %140 = sbr.rel (0) target = $region57
    $region56: #{tpu_custom_call.1} parent=1 // pred_region
      _
    $region57: #{tpu_custom_call.1} parent=1 // pred_fallthru
      _
    // Predicated region
    $region58: #{tpu_custom_call.1} parent=1 // pred_check
      _
    $region59: #{tpu_custom_call.1} parent=1 // pred_check_branch
      %142 = sbr.rel (0) target = $region61
    $region60: #{tpu_custom_call.1} parent=1 // pred_region
      _
    $region61: #{tpu_custom_call.1} parent=1 // pred_fallthru
      _
    // Predicated region
    $region62: #{tpu_custom_call.1} parent=1 // pred_check
      _
    $region63: #{tpu_custom_call.1} parent=1 // pred_check_branch
      %144 = sbr.rel (0) target = $region65
    $region64: #{tpu_custom_call.1} parent=1 // pred_region
      _
    $region65: #{tpu_custom_call.1} parent=1 // pred_fallthru
      _
    // Predicated region
    $region66: #{tpu_custom_call.1} parent=1 // pred_check
      _
    $region67: #{tpu_custom_call.1} parent=1 // pred_check_branch
      %146 = sbr.rel (0) target = $region69
    $region68: #{tpu_custom_call.1} parent=1 // pred_region
      _
    $region69: #{tpu_custom_call.1} parent=1 // pred_fallthru
      _
    // Predicated region
    $region70: #{tpu_custom_call.1} parent=1 // pred_check
      _
    $region71: #{tpu_custom_call.1} parent=1 // pred_check_branch
      %148 = sbr.rel (0) target = $region73
    $region72: #{tpu_custom_call.1} parent=1 // pred_region
      _
    $region73: #{tpu_custom_call.1} parent=1 // pred_fallthru
      _
    // Predicated region
    $region74: #{tpu_custom_call.1} parent=1 // pred_check
      _
    $region75: #{tpu_custom_call.1} parent=1 // pred_check_branch
      %150 = sbr.rel (0) target = $region77
    $region76: #{tpu_custom_call.1} parent=1 // pred_region
      %152 = dma.done [#allocation3], 256
    $region77: #{tpu_custom_call.1} parent=1 // pred_fallthru
      _
    // Predicated region
    $region78: #{tpu_custom_call.1} parent=1 // pred_check
      _
    $region79: #{tpu_custom_call.1} parent=1 // pred_check_branch
      %154 = sbr.rel (0) target = $region81
    $region80: #{tpu_custom_call.1} parent=1 // pred_region
      %156 = dma.done [#allocation6], 512
    $region81: #{tpu_custom_call.1} parent=1 // pred_fallthru
      _
    // Predicated region
    $region82: #{tpu_custom_call.1} parent=1 // pred_check
      _
    $region83: #{tpu_custom_call.1} parent=1 // pred_check_branch
      %158 = sbr.rel (0) target = $region85
    $region84: #{tpu_custom_call.1} parent=1 // pred_region
      %160 = dma.done [#allocation6], 512
    $region85: #{tpu_custom_call.1} parent=1 // pred_fallthru
      _
    // Predicated region
    $region86: #{tpu_custom_call.1} parent=1 // pred_check
      _
    $region87: #{tpu_custom_call.1} parent=1 // pred_check_branch
      %162 = sbr.rel (0) target = $region89
    $region88: #{tpu_custom_call.1} parent=1 // pred_region
      %164 = dma.done [#allocation9], 256
    $region89: #{tpu_custom_call.1} parent=1 // pred_fallthru
      _
    // Predicated region
    $region90: #{tpu_custom_call.1} parent=1 // pred_check
      _
    $region91: #{tpu_custom_call.1} parent=1 // pred_check_branch
      %166 = sbr.rel (0) target = $region93
    $region92: #{tpu_custom_call.1} parent=1 // pred_region
      %168 = dma.done [#allocation9], 256
    $region93: #{tpu_custom_call.1} parent=1 // pred_fallthru
      _
    // Predicated region
    $region94: #{tpu_custom_call.1} parent=1 // pred_check
      _
    $region95: #{tpu_custom_call.1} parent=1 // pred_check_branch
      %170 = sbr.rel (0) target = $region97
    $region96: #{tpu_custom_call.1} parent=1 // pred_region
      %172 = dma.done [#allocation12], 256
    $region97: #{tpu_custom_call.1} parent=1 // pred_fallthru
      _
    // Predicated region
    $region98: #{tpu_custom_call.1} parent=1 // pred_check
      _
    $region99: #{tpu_custom_call.1} parent=1 // pred_check_branch
      %174 = sbr.rel (0) target = $region101
    $region100: #{tpu_custom_call.1} parent=1 // pred_region
      %176 = dma.done [#allocation12], 16
    $region101: #{tpu_custom_call.1} parent=1 // pred_fallthru
      _
    // Predicated region
    $region102: #{tpu_custom_call.1} parent=1 // pred_check
      _
    $region103: #{tpu_custom_call.1} parent=1 // pred_check_branch
      %178 = sbr.rel (0) target = $region105
    $region104: #{tpu_custom_call.1} parent=1 // pred_region
      %180 = dma.done [#allocation15], 16
    $region105: #{tpu_custom_call.1} parent=1 // pred_fallthru
      _
    %v182 = vld [vmem:[%s0] sm:$0xf]
    %v183 = vld [vmem:[%s0 + $0x4] sm:$0xf]
    %v184 = vld [vmem:[#allocation5] sm:$0xf]
    %v185 = vld [vmem:[#allocation5 + $0x4] sm:$0xf]
    %v186 = vld [vmem:[#allocation5 + $0x8] sm:$0xf]
    %v187 = vld [vmem:[#allocation5 + $0xc] sm:$0xf]
    %v188 = vld [vmem:[#allocation5 + $0x10] sm:$0xf]
    %v189 = vld [vmem:[#allocation5 + $0x14] sm:$0xf]
    %v190 = vld [vmem:[#allocation5 + $0x18] sm:$0xf]
    %v191 = vld [vmem:[#allocation5 + $0x1c] sm:$0xf]
    %v194 = vunpack.c.l.b16 %v182
    %v195 = vunpack.c.l.b16 %v183
    %v196 = vpack.c.b16 %v195, %v194
    %v205 = vunpack.c.l.b16 %v184
    %v206 = vunpack.c.l.b16 %v185
    %v207 = vunpack.c.l.b16 %v186
    %v208 = vunpack.c.l.b16 %v187
    %v209 = vunpack.c.l.b16 %v188
    %v210 = vunpack.c.l.b16 %v189
    %v211 = vunpack.c.l.b16 %v190
    %v212 = vunpack.c.l.b16 %v191
    %v213 = vpack.c.b16 %v206, %v205
    %v214 = vpack.c.b16 %v208, %v207
    %v215 = vpack.c.b16 %v210, %v209
    %v216 = vpack.c.b16 %v212, %v211
    %vm221 = vcmask 523264
    %v223 = vsel %vm221, %v196, 0
    %225 = vmatpush.bf16.msra.mxu0 0
    %226 = vmatpush.bf16.msra.mxu0 0
    %227 = vmatpush.bf16.msra.mxu0 0
    %228 = vmatpush.bf16.msra.mxu0 0
    %229 = vmatpush.bf16.msra.mxu0 %v216
    %230 = vmatpush.bf16.msra.mxu0 %v215
    %231 = vmatpush.bf16.msra.mxu0 %v214
    %232 = vmatpush.bf16.msra.mxu0 %v213
    %233 = vmatmul.bf16.gmra.mxu0 %v223
    %v234 = vpop.f32.mrf.mxu0
    %v235 = vadd.f32 0.0, %v234
    %v236 = vpop.f32.mrf.mxu0
    %v237 = vadd.f32 0.0, %v236
    %238 = vdwg.mxu0
    %v239 = vld [vmem:[#allocation7] sm:$0xf]
    %v240 = vld [vmem:[#allocation7 + $0x4] sm:$0xf]
    %v241 = vld [vmem:[#allocation7 + $0x8] sm:$0xf]
    %v242 = vld [vmem:[#allocation7 + $0xc] sm:$0xf]
    %v243 = vld [vmem:[#allocation7 + $0x10] sm:$0xf]
    %v244 = vld [vmem:[#allocation7 + $0x14] sm:$0xf]
    %v245 = vld [vmem:[#allocation7 + $0x18] sm:$0xf]
    %v246 = vld [vmem:[#allocation7 + $0x1c] sm:$0xf]
    %v255 = vunpack.c.l.b16 %v239
    %v256 = vunpack.c.l.b16 %v240
    %v257 = vunpack.c.l.b16 %v241
    %v258 = vunpack.c.l.b16 %v242
    %v259 = vunpack.c.l.b16 %v243
    %v260 = vunpack.c.l.b16 %v244
    %v261 = vunpack.c.l.b16 %v245
    %v262 = vunpack.c.l.b16 %v246
    %v263 = vpack.c.b16 %v256, %v255
    %v264 = vpack.c.b16 %v258, %v257
    %v265 = vpack.c.b16 %v260, %v259
    %v266 = vpack.c.b16 %v262, %v261
    %271 = vmatpush.bf16.msra.mxu0 0
    %272 = vmatpush.bf16.msra.mxu0 0
    %273 = vmatpush.bf16.msra.mxu0 0
    %274 = vmatpush.bf16.msra.mxu0 0
    %275 = vmatpush.bf16.msra.mxu0 %v266
    %276 = vmatpush.bf16.msra.mxu0 %v265
    %277 = vmatpush.bf16.msra.mxu0 %v264
    %278 = vmatpush.bf16.msra.mxu0 %v263
    %279 = vmatmul.bf16.gmra.mxu0 %v223
    %v280 = vpop.f32.mrf.mxu0
    %v281 = vadd.f32 0.0, %v280
    %v282 = vpop.f32.mrf.mxu0
    %v283 = vadd.f32 0.0, %v282
    %284 = vdwg.mxu0
    %v285 = vld [vmem:[%s5] sm:$0xff]
    %v286 = vld [vmem:[%s5 + $0x8] sm:$0xff]
    %v287 = vld [vmem:[%s5 + $0x10] sm:$0xff]
    %v288 = vld [vmem:[%s5 + $0x18] sm:$0xff]
    %v289 = vld [vmem:[%s6] sm:$0xff]
    %v290 = vld [vmem:[%s6 + $0x8] sm:$0xff]
    %v291 = vld [vmem:[%s6 + $0x10] sm:$0xff]
    %v292 = vld [vmem:[%s6 + $0x18] sm:$0xff]
    %vm293 = vcmask 130048
    %v295 = vsel %vm293, %v289, 0
    %v298 = vsel %vm293, %v290, 0
    %v301 = vsel %vm293, %v291, 0
    %v304 = vsel %vm293, %v292, 0
    %306 = vmatpush.msra.mxu0 0.0
    %307 = vmatpush.msra.mxu0 0.0
    %308 = vmatpush.msra.mxu0 0.0
    %309 = vmatpush.msra.mxu0 0.0
    %310 = vmatpush.msra.mxu0 0.0
    %311 = vmatpush.msra.mxu0 0.0
    %312 = vmatpush.msra.mxu0 0.0
    %313 = vmatpush.msra.mxu0 0.0
    %314 = vmatpush.msra.mxu0 0.0
    %315 = vmatpush.msra.mxu0 0.0
    %316 = vmatpush.msra.mxu0 0.0
    %317 = vmatpush.msra.mxu0 0.0
    %318 = vmatpush.msra.mxu0 0.0
    %319 = vmatpush.msra.mxu0 0.0
    %320 = vmatpush.msra.mxu0 %v283
    %321 = vmatpush.msra.mxu0 %v281
    %322 = vmatmul.f32.gmra.mxu0 %v295
    %v323 = vpop.f32.mrf.mxu0
    %v324 = vadd.f32 0.0, %v323
    %325 = vmatmul.f32.gmra.mxu0 %v298
    %v326 = vpop.f32.mrf.mxu0
    %v327 = vadd.f32 0.0, %v326
    %328 = vmatmul.f32.gmra.mxu0 %v301
    %v329 = vpop.f32.mrf.mxu0
    %v330 = vadd.f32 0.0, %v329
    %331 = vmatmul.f32.gmra.mxu0 %v304
    %v332 = vpop.f32.mrf.mxu0
    %v333 = vadd.f32 0.0, %v332
    %334 = vdwg.mxu0
    %v336 = vsel %vm293, %v285, 0
    %v339 = vsel %vm293, %v286, 0
    %v342 = vsel %vm293, %v287, 0
    %v345 = vsel %vm293, %v288, 0
    %347 = vmatpush.msra.mxu0 0.0
    %348 = vmatpush.msra.mxu0 0.0
    %349 = vmatpush.msra.mxu0 0.0
    %350 = vmatpush.msra.mxu0 0.0
    %351 = vmatpush.msra.mxu0 0.0
    %352 = vmatpush.msra.mxu0 0.0
    %353 = vmatpush.msra.mxu0 0.0
    %354 = vmatpush.msra.mxu0 0.0
    %355 = vmatpush.msra.mxu0 0.0
    %356 = vmatpush.msra.mxu0 0.0
    %357 = vmatpush.msra.mxu0 0.0
    %358 = vmatpush.msra.mxu0 0.0
    %359 = vmatpush.msra.mxu0 0.0
    %360 = vmatpush.msra.mxu0 0.0
    %361 = vmatpush.msra.mxu0 %v237
    %362 = vmatpush.msra.mxu0 %v235
    %363 = vmatmul.f32.gmra.mxu0 %v336
    %v364 = vpop.f32.mrf.mxu0
    %v365 = vadd.f32 %v324, %v364
    %366 = vmatmul.f32.gmra.mxu0 %v339
    %v367 = vpop.f32.mrf.mxu0
    %v368 = vadd.f32 %v327, %v367
    %369 = vmatmul.f32.gmra.mxu0 %v342
    %v370 = vpop.f32.mrf.mxu0
    %v371 = vadd.f32 %v330, %v370
    %372 = vmatmul.f32.gmra.mxu0 %v345
    %v373 = vpop.f32.mrf.mxu0
    %v374 = vadd.f32 %v333, %v373
    %375 = vdwg.mxu0
    %v376 = vld [vmem:[%s4] sm:$0x1]
    %v378 = vperm.slane %v376, 0
    %v380 = vadd.f32 %v365, %v378
    %v381 = vadd.f32 %v368, %v378
    %v382 = vadd.f32 %v371, %v378
    %v383 = vadd.f32 %v374, %v378
    %v384 = vld [vmem:[#allocation2] sm:$0xf]
    %v385 = vld [vmem:[#allocation2 + $0x4] sm:$0xf]
    %v386 = vld [vmem:[#allocation2 + $0x8] sm:$0xf]
    %v387 = vld [vmem:[#allocation2 + $0xc] sm:$0xf]
    %v388 = vpack.c.bf16 %v380, %v380
    %v389 = vpack.c.bf16 %v381, %v381
    %v390 = vpack.c.bf16 %v382, %v382
    %v391 = vpack.c.bf16 %v383, %v383
    %v396 = vunpack.c.l.b16 %v384
    %v397 = vunpack.c.l.b16 %v385
    %v398 = vunpack.c.l.b16 %v386
    %v399 = vunpack.c.l.b16 %v387
    %v400 = vpack.c.b16 %v397, %v396
    %v401 = vpack.c.b16 %v399, %v398
    %v406 = vunpack.c.l.b16 %v388
    %v407 = vunpack.c.l.b16 %v389
    %v408 = vunpack.c.l.b16 %v390
    %v409 = vunpack.c.l.b16 %v391
    %v410 = vpack.c.b16 %v407, %v406
    %v411 = vpack.c.b16 %v409, %v408
    %412 = vrot.lane.b32.xlu0 %v410, 64
    %v413 = vpop.permute.xlu0 %412
    %414 = vrot.lane.b32.xlu0 %v411, 64
    %v415 = vpop.permute.xlu0 %414
    %v418 = vsel %vm221, %v400, %v413
    %v422 = vsel %vm221, %v401, %v415
    %v424 = vld [vmem:[#allocation8] sm:$0xf]
    %v425 = vld [vmem:[#allocation8 + $0x4] sm:$0xf]
    %v426 = vld [vmem:[#allocation8 + $0x8] sm:$0xf]
    %v427 = vld [vmem:[#allocation8 + $0xc] sm:$0xf]
    %v432 = vunpack.c.l.b16 %v424
    %v433 = vunpack.c.l.b16 %v425
    %v434 = vunpack.c.l.b16 %v426
    %v435 = vunpack.c.l.b16 %v427
    %v436 = vpack.c.b16 %v433, %v432
    %v437 = vpack.c.b16 %v435, %v434
    %vm438 = vcmask 261120
    %v440 = vsel %vm438, %v436, 0
    %v443 = vsel %vm438, %v437, 0
    %445 = vmatpush.bf16.msra.mxu0 0
    %446 = vmatpush.bf16.msra.mxu0 0
    %447 = vmatpush.bf16.msra.mxu0 0
    %448 = vmatpush.bf16.msra.mxu0 0
    %449 = vmatpush.bf16.msra.mxu0 0
    %450 = vmatpush.bf16.msra.mxu0 0
    %451 = vmatpush.bf16.msra.mxu0 %v422
    %452 = vmatpush.bf16.msra.mxu0 %v418
    %453 = vmatmul.bf16.gmra.mxu0 %v440
    %v454 = vpop.f32.mrf.mxu0
    %v455 = vadd.f32 0.0, %v454
    %v456 = vpop.f32.mrf.mxu0
    %v457 = vadd.f32 0.0, %v456
    %458 = vmatmul.bf16.gmra.mxu0 %v443
    %v459 = vpop.f32.mrf.mxu0
    %v460 = vadd.f32 0.0, %v459
    %v461 = vpop.f32.mrf.mxu0
    %v462 = vadd.f32 0.0, %v461
    %463 = vdwg.mxu0
    %v464 = vpack.c.bf16 %v455, %v455
    %v465 = vpack.c.bf16 %v457, %v457
    %v466 = vpack.c.bf16 %v460, %v460
    %v467 = vpack.c.bf16 %v462, %v462
    %v468 = vld [vmem:[#allocation10] sm:$0xf]
    %v469 = vld [vmem:[#allocation10 + $0x4] sm:$0xf]
    %v470 = vld [vmem:[#allocation10 + $0x8] sm:$0xf]
    %v471 = vld [vmem:[#allocation10 + $0xc] sm:$0xf]
    %v476 = vunpack.c.l.b16 %v468
    %v477 = vunpack.c.l.b16 %v469
    %v478 = vunpack.c.l.b16 %v470
    %v479 = vunpack.c.l.b16 %v471
    %v480 = vpack.c.b16 %v477, %v476
    %v481 = vpack.c.b16 %v479, %v478
    %v483 = vsel %vm438, %v480, 0
    %v486 = vsel %vm438, %v481, 0
    %488 = vmatpush.bf16.msra.mxu0 0
    %489 = vmatpush.bf16.msra.mxu0 0
    %490 = vmatpush.bf16.msra.mxu0 0
    %491 = vmatpush.bf16.msra.mxu0 0
    %492 = vmatpush.bf16.msra.mxu0 0
    %493 = vmatpush.bf16.msra.mxu0 0
    %494 = vmatpush.bf16.msra.mxu0 %v422
    %495 = vmatpush.bf16.msra.mxu0 %v418
    %496 = vmatmul.bf16.gmra.mxu0 %v483
    %v497 = vpop.f32.mrf.mxu0
    %v498 = vadd.f32 0.0, %v497
    %v499 = vpop.f32.mrf.mxu0
    %v500 = vadd.f32 0.0, %v499
    %501 = vmatmul.bf16.gmra.mxu0 %v486
    %v502 = vpop.f32.mrf.mxu0
    %v503 = vadd.f32 0.0, %v502
    %v504 = vpop.f32.mrf.mxu0
    %v505 = vadd.f32 0.0, %v504
    %506 = vdwg.mxu0
    %v507 = vpack.c.bf16 %v498, %v498
    %v508 = vpack.c.bf16 %v500, %v500
    %v509 = vpack.c.bf16 %v503, %v503
    %v510 = vpack.c.bf16 %v505, %v505
    %v511 = vld [vmem:[#allocation11] sm:$0xf]
    %v512 = vld [vmem:[#allocation11 + $0x4] sm:$0xf]
    %v513 = vld [vmem:[#allocation11 + $0x8] sm:$0xf]
    %v514 = vld [vmem:[#allocation11 + $0xc] sm:$0xf]
    %v519 = vunpack.c.l.b16 %v511
    %v520 = vunpack.c.l.b16 %v512
    %v521 = vunpack.c.l.b16 %v513
    %v522 = vunpack.c.l.b16 %v514
    %v523 = vpack.c.b16 %v520, %v519
    %v524 = vpack.c.b16 %v522, %v521
    %v526 = vsel %vm438, %v523, 0
    %v529 = vsel %vm438, %v524, 0
    %531 = vmatpush.bf16.msra.mxu0 0
    %532 = vmatpush.bf16.msra.mxu0 0
    %533 = vmatpush.bf16.msra.mxu0 0
    %534 = vmatpush.bf16.msra.mxu0 0
    %535 = vmatpush.bf16.msra.mxu0 0
    %536 = vmatpush.bf16.msra.mxu0 0
    %537 = vmatpush.bf16.msra.mxu0 %v422
    %538 = vmatpush.bf16.msra.mxu0 %v418
    %539 = vmatmul.bf16.gmra.mxu0 %v526
    %v540 = vpop.f32.mrf.mxu0
    %v541 = vadd.f32 0.0, %v540
    %v542 = vpop.f32.mrf.mxu0
    %v543 = vadd.f32 0.0, %v542
    %544 = vmatmul.bf16.gmra.mxu0 %v529
    %v545 = vpop.f32.mrf.mxu0
    %v546 = vadd.f32 0.0, %v545
    %v547 = vpop.f32.mrf.mxu0
    %v548 = vadd.f32 0.0, %v547
    %549 = vdwg.mxu0
    %v550 = vpack.c.bf16 %v541, %v541
    %v551 = vpack.c.bf16 %v543, %v543
    %v552 = vpack.c.bf16 %v546, %v546
    %v553 = vpack.c.bf16 %v548, %v548
    %v558 = vunpack.c.l.b16 %v464
    %v559 = vunpack.c.l.b16 %v465
    %v560 = vunpack.c.l.b16 %v466
    %v561 = vunpack.c.l.b16 %v467
    %v562 = vpack.c.b16 %v559, %v558
    %v563 = vpack.c.b16 %v561, %v560
    %v570 = vunpack.c.l.b16 %v507
    %v571 = vunpack.c.l.b16 %v508
    %v572 = vunpack.c.l.b16 %v509
    %v573 = vunpack.c.l.b16 %v510
    %v574 = vpack.c.b16 %v571, %v570
    %v575 = vpack.c.b16 %v573, %v572
    %v582 = vunpack.c.l.b16 %v550
    %v583 = vunpack.c.l.b16 %v551
    %v584 = vunpack.c.l.b16 %v552
    %v585 = vunpack.c.l.b16 %v553
    %v586 = vpack.c.b16 %v583, %v582
    %v587 = vpack.c.b16 %v585, %v584
    %v590 = vld [vmem:[%s10] sm:$0xf]
    %v591 = vld [vmem:[%s10 + $0x4] sm:$0xf]
    %v592 = vld [vmem:[%s10 + $0x8] sm:$0xf]
    %v593 = vld [vmem:[%s10 + $0xc] sm:$0xf]
    %v594 = vld [vmem:[%s10 + $0x10] sm:$0xf]
    %v595 = vld [vmem:[%s10 + $0x14] sm:$0xf]
    %v596 = vld [vmem:[%s10 + $0x18] sm:$0xf]
    %v597 = vld [vmem:[%s10 + $0x1c] sm:$0xf]
    %v598 = vld [vmem:[%s10 + $0x20] sm:$0xf]
    %v599 = vld [vmem:[%s10 + $0x24] sm:$0xf]
    %v600 = vld [vmem:[%s10 + $0x28] sm:$0xf]
    %v601 = vld [vmem:[%s10 + $0x2c] sm:$0xf]
    %v602 = vld [vmem:[%s10 + $0x30] sm:$0xf]
    %v603 = vld [vmem:[%s10 + $0x34] sm:$0xf]
    %v604 = vld [vmem:[%s10 + $0x38] sm:$0xf]
    %v605 = vld [vmem:[%s10 + $0x3c] sm:$0xf]
    %v606 = vld [vmem:[%s10 + $0x40] sm:$0xf]
    %v607 = vld [vmem:[%s10 + $0x44] sm:$0xf]
    %v608 = vld [vmem:[%s10 + $0x48] sm:$0xf]
    %v609 = vld [vmem:[%s10 + $0x4c] sm:$0xf]
    %v610 = vld [vmem:[%s10 + $0x50] sm:$0xf]
    %v611 = vld [vmem:[%s10 + $0x54] sm:$0xf]
    %v612 = vld [vmem:[%s10 + $0x58] sm:$0xf]
    %v613 = vld [vmem:[%s10 + $0x5c] sm:$0xf]
    %v614 = vld [vmem:[%s10 + $0x60] sm:$0xf]
    %v615 = vld [vmem:[%s10 + $0x64] sm:$0xf]
    %v616 = vld [vmem:[%s10 + $0x68] sm:$0xf]
    %v617 = vld [vmem:[%s10 + $0x6c] sm:$0xf]
    %v618 = vld [vmem:[%s10 + $0x70] sm:$0xf]
    %v619 = vld [vmem:[%s10 + $0x74] sm:$0xf]
    %v620 = vld [vmem:[%s10 + $0x78] sm:$0xf]
    %v621 = vld [vmem:[%s10 + $0x7c] sm:$0xf]
    %v622 = vld [vmem:[%s10 + $0x80] sm:$0xf]
    %v623 = vld [vmem:[%s10 + $0x84] sm:$0xf]
    %v624 = vld [vmem:[%s10 + $0x88] sm:$0xf]
    %v625 = vld [vmem:[%s10 + $0x8c] sm:$0xf]
    %v626 = vld [vmem:[%s10 + $0x90] sm:$0xf]
    %v627 = vld [vmem:[%s10 + $0x94] sm:$0xf]
    %v628 = vld [vmem:[%s10 + $0x98] sm:$0xf]
    %v629 = vld [vmem:[%s10 + $0x9c] sm:$0xf]
    %v630 = vld [vmem:[%s10 + $0xa0] sm:$0xf]
    %v631 = vld [vmem:[%s10 + $0xa4] sm:$0xf]
    %v632 = vld [vmem:[%s10 + $0xa8] sm:$0xf]
    %v633 = vld [vmem:[%s10 + $0xac] sm:$0xf]
    %v634 = vld [vmem:[%s10 + $0xb0] sm:$0xf]
    %v635 = vld [vmem:[%s10 + $0xb4] sm:$0xf]
    %v636 = vld [vmem:[%s10 + $0xb8] sm:$0xf]
    %v637 = vld [vmem:[%s10 + $0xbc] sm:$0xf]
    %v686 = vunpack.c.l.b16 %v590
    %v687 = vunpack.c.l.b16 %v591
    %v688 = vunpack.c.l.b16 %v592
    %v689 = vunpack.c.l.b16 %v593
    %v690 = vunpack.c.l.b16 %v594
    %v691 = vunpack.c.l.b16 %v595
    %v692 = vunpack.c.l.b16 %v596
    %v693 = vunpack.c.l.b16 %v597
    %v694 = vunpack.c.l.b16 %v598
    %v695 = vunpack.c.l.b16 %v599
    %v696 = vunpack.c.l.b16 %v600
    %v697 = vunpack.c.l.b16 %v601
    %v698 = vunpack.c.l.b16 %v602
    %v699 = vunpack.c.l.b16 %v603
    %v700 = vunpack.c.l.b16 %v604
    %v701 = vunpack.c.l.b16 %v605
    %v702 = vunpack.c.l.b16 %v606
    %v703 = vunpack.c.l.b16 %v607
    %v704 = vunpack.c.l.b16 %v608
    %v705 = vunpack.c.l.b16 %v609
    %v706 = vunpack.c.l.b16 %v610
    %v707 = vunpack.c.l.b16 %v611
    %v708 = vunpack.c.l.b16 %v612
    %v709 = vunpack.c.l.b16 %v613
    %v710 = vunpack.c.l.b16 %v614
    %v711 = vunpack.c.l.b16 %v615
    %v712 = vunpack.c.l.b16 %v616
    %v713 = vunpack.c.l.b16 %v617
    %v714 = vunpack.c.l.b16 %v618
    %v715 = vunpack.c.l.b16 %v619
    %v716 = vunpack.c.l.b16 %v620
    %v717 = vunpack.c.l.b16 %v621
    %v718 = vunpack.c.l.b16 %v622
    %v719 = vunpack.c.l.b16 %v623
    %v720 = vunpack.c.l.b16 %v624
    %v721 = vunpack.c.l.b16 %v625
    %v722 = vunpack.c.l.b16 %v626
    %v723 = vunpack.c.l.b16 %v627
    %v724 = vunpack.c.l.b16 %v628
    %v725 = vunpack.c.l.b16 %v629
    %v726 = vunpack.c.l.b16 %v630
    %v727 = vunpack.c.l.b16 %v631
    %v728 = vunpack.c.l.b16 %v632
    %v729 = vunpack.c.l.b16 %v633
    %v730 = vunpack.c.l.b16 %v634
    %v731 = vunpack.c.l.b16 %v635
    %v732 = vunpack.c.l.b16 %v636
    %v733 = vunpack.c.l.b16 %v637
    %v734 = vpack.c.b16 %v687, %v686
    %v735 = vpack.c.b16 %v689, %v688
    %v736 = vpack.c.b16 %v691, %v690
    %v737 = vpack.c.b16 %v693, %v692
    %v738 = vpack.c.b16 %v695, %v694
    %v739 = vpack.c.b16 %v697, %v696
    %v740 = vpack.c.b16 %v699, %v698
    %v741 = vpack.c.b16 %v701, %v700
    %v742 = vpack.c.b16 %v703, %v702
    %v743 = vpack.c.b16 %v705, %v704
    %v744 = vpack.c.b16 %v707, %v706
    %v745 = vpack.c.b16 %v709, %v708
    %v746 = vpack.c.b16 %v711, %v710
    %v747 = vpack.c.b16 %v713, %v712
    %v748 = vpack.c.b16 %v715, %v714
    %v749 = vpack.c.b16 %v717, %v716
    %v750 = vpack.c.b16 %v719, %v718
    %v751 = vpack.c.b16 %v721, %v720
    %v752 = vpack.c.b16 %v723, %v722
    %v753 = vpack.c.b16 %v725, %v724
    %v754 = vpack.c.b16 %v727, %v726
    %v755 = vpack.c.b16 %v729, %v728
    %v756 = vpack.c.b16 %v731, %v730
    %v757 = vpack.c.b16 %v733, %v732
    %782 = vmatpush.bf16.msra.mxu0 %v741
    %783 = vmatpush.bf16.msra.mxu0 %v740
    %784 = vmatpush.bf16.msra.mxu0 %v739
    %785 = vmatpush.bf16.msra.mxu0 %v738
    %786 = vmatpush.bf16.msra.mxu0 %v737
    %787 = vmatpush.bf16.msra.mxu0 %v736
    %788 = vmatpush.bf16.msra.mxu0 %v735
    %789 = vmatpush.bf16.msra.mxu0 %v734
    %790 = vmatmul.bf16.gmra.mxu0 %v562
    %v791 = vpop.f32.mrf.mxu0
    %v792 = vadd.f32 0.0, %v791
    %v793 = vpop.f32.mrf.mxu0
    %v794 = vadd.f32 0.0, %v793
    %795 = vmatmul.bf16.gmra.mxu0 %v563
    %v796 = vpop.f32.mrf.mxu0
    %v797 = vadd.f32 0.0, %v796
    %v798 = vpop.f32.mrf.mxu0
    %v799 = vadd.f32 0.0, %v798
    %800 = vdwg.mxu0
    %801 = vmatpush.bf16.msra.mxu0 %v749
    %802 = vmatpush.bf16.msra.mxu0 %v748
    %803 = vmatpush.bf16.msra.mxu0 %v747
    %804 = vmatpush.bf16.msra.mxu0 %v746
    %805 = vmatpush.bf16.msra.mxu0 %v745
    %806 = vmatpush.bf16.msra.mxu0 %v744
    %807 = vmatpush.bf16.msra.mxu0 %v743
    %808 = vmatpush.bf16.msra.mxu0 %v742
    %809 = vmatmul.bf16.gmra.mxu0 %v574
    %v810 = vpop.f32.mrf.mxu0
    %v811 = vadd.f32 %v792, %v810
    %v812 = vpop.f32.mrf.mxu0
    %v813 = vadd.f32 %v794, %v812
    %814 = vmatmul.bf16.gmra.mxu0 %v575
    %v815 = vpop.f32.mrf.mxu0
    %v816 = vadd.f32 %v797, %v815
    %v817 = vpop.f32.mrf.mxu0
    %v818 = vadd.f32 %v799, %v817
    %819 = vdwg.mxu0
    %820 = vmatpush.bf16.msra.mxu0 %v757
    %821 = vmatpush.bf16.msra.mxu0 %v756
    %822 = vmatpush.bf16.msra.mxu0 %v755
    %823 = vmatpush.bf16.msra.mxu0 %v754
    %824 = vmatpush.bf16.msra.mxu0 %v753
    %825 = vmatpush.bf16.msra.mxu0 %v752
    %826 = vmatpush.bf16.msra.mxu0 %v751
    %827 = vmatpush.bf16.msra.mxu0 %v750
    %828 = vmatmul.bf16.gmra.mxu0 %v586
    %v829 = vpop.f32.mrf.mxu0
    %v830 = vadd.f32 %v811, %v829
    %v831 = vpop.f32.mrf.mxu0
    %v832 = vadd.f32 %v813, %v831
    %833 = vmatmul.bf16.gmra.mxu0 %v587
    %v834 = vpop.f32.mrf.mxu0
    %v835 = vadd.f32 %v816, %v834
    %v836 = vpop.f32.mrf.mxu0
    %v837 = vadd.f32 %v818, %v836
    %838 = vdwg.mxu0
    %v839 = vsel %vm221, %v830, 0.0
    %v840 = vsel %vm221, %v832, 0.0
    %v841 = vadd.f32 %v839, %v840
    %v842 = vsel %vm221, %v835, 0.0
    %v843 = vadd.f32 %v841, %v842
    %v844 = vsel %vm221, %v837, 0.0
    %v845 = vadd.f32 %v843, %v844
    %v846 = vrot.slane %v845, 4
    %v847 = vadd.f32 %v845, %v846
    %v848 = vrot.slane %v847, 2
    %v849 = vadd.f32 %v847, %v848
    %v850 = vrot.slane %v849, 1
    %v851 = vadd.f32 %v849, %v850
    %v852 = vmul.f32 %v830, %v830
    %v853 = vmul.f32 %v832, %v832
    %v854 = vmul.f32 %v835, %v835
    %v855 = vmul.f32 %v837, %v837
    %v856 = vsel %vm221, %v852, 0.0
    %v857 = vsel %vm221, %v853, 0.0
    %v858 = vadd.f32 %v856, %v857
    %v859 = vsel %vm221, %v854, 0.0
    %v860 = vadd.f32 %v858, %v859
    %v861 = vsel %vm221, %v855, 0.0
    %v862 = vadd.f32 %v860, %v861
    %v863 = vrot.slane %v862, 4
    %v864 = vadd.f32 %v862, %v863
    %v865 = vrot.slane %v864, 2
    %v866 = vadd.f32 %v864, %v865
    %v867 = vrot.slane %v866, 1
    %v868 = vadd.f32 %v866, %v867
    %v869 = vld [vmem:[%s13] sm:$0xff]
    %v870 = vld [vmem:[%s13 + $0x8] sm:$0xff]
    %v871 = vld [vmem:[%s13 + $0x10] sm:$0xff]
    %v872 = vld [vmem:[%s13 + $0x18] sm:$0xff]
    %v873 = vld [vmem:[%s13 + $0x20] sm:$0xff]
    %v874 = vld [vmem:[%s13 + $0x28] sm:$0xff]
    %v875 = vld [vmem:[%s13 + $0x30] sm:$0xff]
    %v876 = vld [vmem:[%s13 + $0x38] sm:$0xff]
    %v878 = vsel %vm221, %v851, 0
    %880 = vmatpush.msra.mxu0 0.0
    %881 = vmatpush.msra.mxu0 0.0
    %882 = vmatpush.msra.mxu0 0.0
    %883 = vmatpush.msra.mxu0 0.0
    %884 = vmatpush.msra.mxu0 0.0
    %885 = vmatpush.msra.mxu0 0.0
    %886 = vmatpush.msra.mxu0 0.0
    %887 = vmatpush.msra.mxu0 0.0
    %888 = vmatpush.msra.mxu0 %v876
    %889 = vmatpush.msra.mxu0 %v875
    %890 = vmatpush.msra.mxu0 %v874
    %891 = vmatpush.msra.mxu0 %v873
    %892 = vmatpush.msra.mxu0 %v872
    %893 = vmatpush.msra.mxu0 %v871
    %894 = vmatpush.msra.mxu0 %v870
    %895 = vmatpush.msra.mxu0 %v869
    %896 = vmatmul.f32.gmra.mxu0 %v878
    %v897 = vpop.f32.mrf.mxu0
    %v898 = vadd.f32 0.0, %v897
    %899 = vdwg.mxu0
    %v900 = vmul.f32 %v898, 0.001953125
    %v902 = vsel %vm221, %v868, 0
    %904 = vmatpush.msra.mxu0 0.0
    %905 = vmatpush.msra.mxu0 0.0
    %906 = vmatpush.msra.mxu0 0.0
    %907 = vmatpush.msra.mxu0 0.0
    %908 = vmatpush.msra.mxu0 0.0
    %909 = vmatpush.msra.mxu0 0.0
    %910 = vmatpush.msra.mxu0 0.0
    %911 = vmatpush.msra.mxu0 0.0
    %912 = vmatpush.msra.mxu0 %v876
    %913 = vmatpush.msra.mxu0 %v875
    %914 = vmatpush.msra.mxu0 %v874
    %915 = vmatpush.msra.mxu0 %v873
    %916 = vmatpush.msra.mxu0 %v872
    %917 = vmatpush.msra.mxu0 %v871
    %918 = vmatpush.msra.mxu0 %v870
    %919 = vmatpush.msra.mxu0 %v869
    %920 = vmatmul.f32.gmra.mxu0 %v902
    %v921 = vpop.f32.mrf.mxu0
    %v922 = vadd.f32 0.0, %v921
    %923 = vdwg.mxu0
    %v924 = vmul.f32 %v922, 0.001953125
    %v925 = vmul.f32 %v900, %v900
    %v926 = vsub.f32 %v924, %v925
    %v927 = vadd.f32 %v926, 1e-05
    %v928 = vrsqrt.pop %v927
    %v929 = vmul.f32 %v928, %v927
    %v930 = vmul.f32 %v929, %v928
    %v931 = vmul.f32 0.5, %v930
    %v932 = vsub.f32 1.5, %v931
    %v933 = vmul.f32 %v928, %v932
    %vm934 = vweird.f32 %v927
    %vm935 = vweird.f32 %v928
    %vm936 = vmor %vm934, %vm935
    %v937 = vsel %vm936, %v928, %v933
    %v938 = vld [vmem:[#allocation13] sm:$0x1]
    %v939 = vmul.f32 %v938, %v937
    %v940 = vld [vmem:[#allocation14] sm:$0x1]
    %v941 = vmul.f32 %v900, %v939
    %v942 = vsub.f32 %v940, %v941
    %v944 = vperm.slane %v939, 0
    %v946 = vmul.f32 %v830, %v944
    %v947 = vmul.f32 %v832, %v944
    %v948 = vmul.f32 %v835, %v944
    %v949 = vmul.f32 %v837, %v944
    %v951 = vperm.slane %v942, 0
    %v953 = vadd.f32 %v946, %v951
    %v954 = vadd.f32 %v947, %v951
    %v955 = vadd.f32 %v948, %v951
    %v956 = vadd.f32 %v949, %v951
    %v957 = vmax.f32 %v953, 0.0
    %v958 = vmax.f32 %v954, 0.0
    %v959 = vmax.f32 %v955, 0.0
    %v960 = vmax.f32 %v956, 0.0
    %v961 = vpack.c.bf16 %v958, %v957
    %v962 = vpack.c.bf16 %v960, %v959
    %963 = vmatpush.bf16.msra.mxu0 0
    %964 = vmatpush.bf16.msra.mxu0 0
    %965 = vmatpush.bf16.msra.mxu0 0
    %966 = vmatpush.bf16.msra.mxu0 0
    %967 = vmatpush.bf16.msra.mxu0 0
    %968 = vmatpush.bf16.msra.mxu0 0
    %969 = vmatpush.bf16.msra.mxu0 %v962
    %970 = vmatpush.bf16.msra.mxu0 %v961
    %971 = vmatmul.bf16.gmra.mxu0 %v440
    %v972 = vpop.f32.mrf.mxu0
    %v973 = vadd.f32 0.0, %v972
    %v974 = vpop.f32.mrf.mxu0
    %v975 = vadd.f32 0.0, %v974
    %976 = vmatmul.bf16.gmra.mxu0 %v443
    %v977 = vpop.f32.mrf.mxu0
    %v978 = vadd.f32 0.0, %v977
    %v979 = vpop.f32.mrf.mxu0
    %v980 = vadd.f32 0.0, %v979
    %981 = vdwg.mxu0
    %v982 = vpack.c.bf16 %v973, %v973
    %v983 = vpack.c.bf16 %v975, %v975
    %v984 = vpack.c.bf16 %v978, %v978
    %v985 = vpack.c.bf16 %v980, %v980
    %986 = vmatpush.bf16.msra.mxu0 0
    %987 = vmatpush.bf16.msra.mxu0 0
    %988 = vmatpush.bf16.msra.mxu0 0
    %989 = vmatpush.bf16.msra.mxu0 0
    %990 = vmatpush.bf16.msra.mxu0 0
    %991 = vmatpush.bf16.msra.mxu0 0
    %992 = vmatpush.bf16.msra.mxu0 %v962
    %993 = vmatpush.bf16.msra.mxu0 %v961
    %994 = vmatmul.bf16.gmra.mxu0 %v483
    %v995 = vpop.f32.mrf.mxu0
    %v996 = vadd.f32 0.0, %v995
    %v997 = vpop.f32.mrf.mxu0
    %v998 = vadd.f32 0.0, %v997
    %999 = vmatmul.bf16.gmra.mxu0 %v486
    %v1000 = vpop.f32.mrf.mxu0
    %v1001 = vadd.f32 0.0, %v1000
    %v1002 = vpop.f32.mrf.mxu0
    %v1003 = vadd.f32 0.0, %v1002
    %1004 = vdwg.mxu0
    %v1005 = vpack.c.bf16 %v996, %v996
    %v1006 = vpack.c.bf16 %v998, %v998
    %v1007 = vpack.c.bf16 %v1001, %v1001
    %v1008 = vpack.c.bf16 %v1003, %v1003
    %1009 = vmatpush.bf16.msra.mxu0 0
    %1010 = vmatpush.bf16.msra.mxu0 0
    %1011 = vmatpush.bf16.msra.mxu0 0
    %1012 = vmatpush.bf16.msra.mxu0 0
    %1013 = vmatpush.bf16.msra.mxu0 0
    %1014 = vmatpush.bf16.msra.mxu0 0
    %1015 = vmatpush.bf16.msra.mxu0 %v962
    %1016 = vmatpush.bf16.msra.mxu0 %v961
    %1017 = vmatmul.bf16.gmra.mxu0 %v526
    %v1018 = vpop.f32.mrf.mxu0
    %v1019 = vadd.f32 0.0, %v1018
    %v1020 = vpop.f32.mrf.mxu0
    %v1021 = vadd.f32 0.0, %v1020
    %1022 = vmatmul.bf16.gmra.mxu0 %v529
    %v1023 = vpop.f32.mrf.mxu0
    %v1024 = vadd.f32 0.0, %v1023
    %v1025 = vpop.f32.mrf.mxu0
    %v1026 = vadd.f32 0.0, %v1025
    %1027 = vdwg.mxu0
    %v1028 = vpack.c.bf16 %v1019, %v1019
    %v1029 = vpack.c.bf16 %v1021, %v1021
    %v1030 = vpack.c.bf16 %v1024, %v1024
    %v1031 = vpack.c.bf16 %v1026, %v1026
    %v1036 = vunpack.c.l.b16 %v982
    %v1037 = vunpack.c.l.b16 %v983
    %v1038 = vunpack.c.l.b16 %v984
    %v1039 = vunpack.c.l.b16 %v985
    %v1040 = vpack.c.b16 %v1037, %v1036
    %v1041 = vpack.c.b16 %v1039, %v1038
    %v1046 = vunpack.c.l.b16 %v1005
    %v1047 = vunpack.c.l.b16 %v1006
    %v1048 = vunpack.c.l.b16 %v1007
    %v1049 = vunpack.c.l.b16 %v1008
    %v1050 = vpack.c.b16 %v1047, %v1046
    %v1051 = vpack.c.b16 %v1049, %v1048
    %1052 = vrot.lane.b32.xlu0 %v1050, 64
    %v1053 = vpop.permute.xlu0 %1052
    %1054 = vrot.lane.b32.xlu0 %v1051, 64
    %v1055 = vpop.permute.xlu0 %1054
    %v1060 = vunpack.c.l.b16 %v1028
    %v1061 = vunpack.c.l.b16 %v1029
    %v1062 = vunpack.c.l.b16 %v1030
    %v1063 = vunpack.c.l.b16 %v1031
    %v1064 = vpack.c.b16 %v1061, %v1060
    %v1065 = vpack.c.b16 %v1063, %v1062
    %v1068 = vsel %vm221, %v1040, %v1053
    %v1072 = vsel %vm221, %v1041, %v1055
    %v1074 = vld [vmem:[%s14] sm:$0xf]
    %v1075 = vld [vmem:[%s14 + $0x4] sm:$0xf]
    %v1076 = vld [vmem:[%s14 + $0x8] sm:$0xf]
    %v1077 = vld [vmem:[%s14 + $0xc] sm:$0xf]
    %v1078 = vld [vmem:[%s14 + $0x10] sm:$0xf]
    %v1079 = vld [vmem:[%s14 + $0x14] sm:$0xf]
    %v1080 = vld [vmem:[%s14 + $0x18] sm:$0xf]
    %v1081 = vld [vmem:[%s14 + $0x1c] sm:$0xf]
    %v1082 = vld [vmem:[%s14 + $0x20] sm:$0xf]
    %v1083 = vld [vmem:[%s14 + $0x24] sm:$0xf]
    %v1084 = vld [vmem:[%s14 + $0x28] sm:$0xf]
    %v1085 = vld [vmem:[%s14 + $0x2c] sm:$0xf]
    %v1086 = vld [vmem:[%s14 + $0x30] sm:$0xf]
    %v1087 = vld [vmem:[%s14 + $0x34] sm:$0xf]
    %v1088 = vld [vmem:[%s14 + $0x38] sm:$0xf]
    %v1089 = vld [vmem:[%s14 + $0x3c] sm:$0xf]
    %v1090 = vld [vmem:[%s14 + $0x40] sm:$0xf]
    %v1091 = vld [vmem:[%s14 + $0x44] sm:$0xf]
    %v1092 = vld [vmem:[%s14 + $0x48] sm:$0xf]
    %v1093 = vld [vmem:[%s14 + $0x4c] sm:$0xf]
    %v1094 = vld [vmem:[%s14 + $0x50] sm:$0xf]
    %v1095 = vld [vmem:[%s14 + $0x54] sm:$0xf]
    %v1096 = vld [vmem:[%s14 + $0x58] sm:$0xf]
    %v1097 = vld [vmem:[%s14 + $0x5c] sm:$0xf]
    %v1122 = vunpack.c.l.b16 %v1074
    %v1123 = vunpack.c.l.b16 %v1075
    %v1124 = vunpack.c.l.b16 %v1076
    %v1125 = vunpack.c.l.b16 %v1077
    %v1126 = vunpack.c.l.b16 %v1078
    %v1127 = vunpack.c.l.b16 %v1079
    %v1128 = vunpack.c.l.b16 %v1080
    %v1129 = vunpack.c.l.b16 %v1081
    %v1130 = vunpack.c.l.b16 %v1082
    %v1131 = vunpack.c.l.b16 %v1083
    %v1132 = vunpack.c.l.b16 %v1084
    %v1133 = vunpack.c.l.b16 %v1085
    %v1134 = vunpack.c.l.b16 %v1086
    %v1135 = vunpack.c.l.b16 %v1087
    %v1136 = vunpack.c.l.b16 %v1088
    %v1137 = vunpack.c.l.b16 %v1089
    %v1138 = vunpack.c.l.b16 %v1090
    %v1139 = vunpack.c.l.b16 %v1091
    %v1140 = vunpack.c.l.b16 %v1092
    %v1141 = vunpack.c.l.b16 %v1093
    %v1142 = vunpack.c.l.b16 %v1094
    %v1143 = vunpack.c.l.b16 %v1095
    %v1144 = vunpack.c.l.b16 %v1096
    %v1145 = vunpack.c.l.b16 %v1097
    %v1146 = vpack.c.b16 %v1123, %v1122
    %v1147 = vpack.c.b16 %v1125, %v1124
    %v1148 = vpack.c.b16 %v1127, %v1126
    %v1149 = vpack.c.b16 %v1129, %v1128
    %v1150 = vpack.c.b16 %v1131, %v1130
    %v1151 = vpack.c.b16 %v1133, %v1132
    %v1152 = vpack.c.b16 %v1135, %v1134
    %v1153 = vpack.c.b16 %v1137, %v1136
    %v1154 = vpack.c.b16 %v1139, %v1138
    %v1155 = vpack.c.b16 %v1141, %v1140
    %v1156 = vpack.c.b16 %v1143, %v1142
    %v1157 = vpack.c.b16 %v1145, %v1144
    %v1171 = vsel %vm221, %v1064, 0
    %v1174 = vsel %vm221, %v1065, 0
    %1176 = vmatpush.bf16.msra.mxu0 %v1153
    %1177 = vmatpush.bf16.msra.mxu0 %v1152
    %1178 = vmatpush.bf16.msra.mxu0 %v1151
    %1179 = vmatpush.bf16.msra.mxu0 %v1150
    %1180 = vmatpush.bf16.msra.mxu0 %v1149
    %1181 = vmatpush.bf16.msra.mxu0 %v1148
    %1182 = vmatpush.bf16.msra.mxu0 %v1147
    %1183 = vmatpush.bf16.msra.mxu0 %v1146
    %1184 = vmatmul.bf16.gmra.mxu0 %v1068
    %v1185 = vpop.f32.mrf.mxu0
    %v1186 = vadd.f32 0.0, %v1185
    %v1187 = vpop.f32.mrf.mxu0
    %v1188 = vadd.f32 0.0, %v1187
    %1189 = vmatmul.bf16.gmra.mxu0 %v1072
    %v1190 = vpop.f32.mrf.mxu0
    %v1191 = vadd.f32 0.0, %v1190
    %v1192 = vpop.f32.mrf.mxu0
    %v1193 = vadd.f32 0.0, %v1192
    %1194 = vdwg.mxu0
    %1195 = vmatpush.bf16.msra.mxu0 0
    %1196 = vmatpush.bf16.msra.mxu0 0
    %1197 = vmatpush.bf16.msra.mxu0 0
    %1198 = vmatpush.bf16.msra.mxu0 0
    %1199 = vmatpush.bf16.msra.mxu0 %v1157
    %1200 = vmatpush.bf16.msra.mxu0 %v1156
    %1201 = vmatpush.bf16.msra.mxu0 %v1155
    %1202 = vmatpush.bf16.msra.mxu0 %v1154
    %1203 = vmatmul.bf16.gmra.mxu0 %v1171
    %v1204 = vpop.f32.mrf.mxu0
    %v1205 = vadd.f32 %v1186, %v1204
    %v1206 = vpop.f32.mrf.mxu0
    %v1207 = vadd.f32 %v1188, %v1206
    %1208 = vmatmul.bf16.gmra.mxu0 %v1174
    %v1209 = vpop.f32.mrf.mxu0
    %v1210 = vadd.f32 %v1191, %v1209
    %v1211 = vpop.f32.mrf.mxu0
    %v1212 = vadd.f32 %v1193, %v1211
    %1213 = vdwg.mxu0
    %v1214 = vadd.f32 %v1205, %v1207
    %v1215 = vadd.f32 %v1214, %v1210
    %v1216 = vadd.f32 %v1215, %v1212
    %v1217 = vrot.slane %v1216, 4
    %v1218 = vadd.f32 %v1216, %v1217
    %v1219 = vrot.slane %v1218, 2
    %v1220 = vadd.f32 %v1218, %v1219
    %v1221 = vrot.slane %v1220, 1
    %v1222 = vadd.f32 %v1220, %v1221
    %v1223 = vmul.f32 %v1205, %v1205
    %v1224 = vmul.f32 %v1207, %v1207
    %v1225 = vmul.f32 %v1210, %v1210
    %v1226 = vmul.f32 %v1212, %v1212
    %v1227 = vadd.f32 %v1223, %v1224
    %v1228 = vadd.f32 %v1227, %v1225
    %v1229 = vadd.f32 %v1228, %v1226
    %v1230 = vrot.slane %v1229, 4
    %v1231 = vadd.f32 %v1229, %v1230
    %v1232 = vrot.slane %v1231, 2
    %v1233 = vadd.f32 %v1231, %v1232
    %v1234 = vrot.slane %v1233, 1
    %v1235 = vadd.f32 %v1233, %v1234
    %v1236 = vld [vmem:[%s17] sm:$0xff]
    %v1237 = vld [vmem:[%s17 + $0x8] sm:$0xff]
    %v1238 = vld [vmem:[%s17 + $0x10] sm:$0xff]
    %v1239 = vld [vmem:[%s17 + $0x18] sm:$0xff]
    %v1240 = vld [vmem:[%s17 + $0x20] sm:$0xff]
    %v1241 = vld [vmem:[%s17 + $0x28] sm:$0xff]
    %v1242 = vld [vmem:[%s17 + $0x30] sm:$0xff]
    %v1243 = vld [vmem:[%s17 + $0x38] sm:$0xff]
    %v1244 = vld [vmem:[%s17 + $0x40] sm:$0xff]
    %v1245 = vld [vmem:[%s17 + $0x48] sm:$0xff]
    %v1246 = vld [vmem:[%s17 + $0x50] sm:$0xff]
    %v1247 = vld [vmem:[%s17 + $0x58] sm:$0xff]
    %v1248 = vld [vmem:[%s17 + $0x60] sm:$0xff]
    %v1249 = vld [vmem:[%s17 + $0x68] sm:$0xff]
    %v1250 = vld [vmem:[%s17 + $0x70] sm:$0xff]
    %v1251 = vld [vmem:[%s17 + $0x78] sm:$0xff]
    %1252 = vmatpush.msra.mxu0 %v1251
    %1253 = vmatpush.msra.mxu0 %v1250
    %1254 = vmatpush.msra.mxu0 %v1249
    %1255 = vmatpush.msra.mxu0 %v1248
    %1256 = vmatpush.msra.mxu0 %v1247
    %1257 = vmatpush.msra.mxu0 %v1246
    %1258 = vmatpush.msra.mxu0 %v1245
    %1259 = vmatpush.msra.mxu0 %v1244
    %1260 = vmatpush.msra.mxu0 %v1243
    %1261 = vmatpush.msra.mxu0 %v1242
    %1262 = vmatpush.msra.mxu0 %v1241
    %1263 = vmatpush.msra.mxu0 %v1240
    %1264 = vmatpush.msra.mxu0 %v1239
    %1265 = vmatpush.msra.mxu0 %v1238
    %1266 = vmatpush.msra.mxu0 %v1237
    %1267 = vmatpush.msra.mxu0 %v1236
    %1268 = vmatmul.f32.gmra.mxu0 %v1222
    %v1269 = vpop.f32.mrf.mxu0
    %v1270 = vadd.f32 0.0, %v1269
    %1271 = vdwg.mxu0
    %v1272 = vmul.f32 %v1270, 0.001953125
    %1273 = vmatpush.msra.mxu0 %v1251
    %1274 = vmatpush.msra.mxu0 %v1250
    %1275 = vmatpush.msra.mxu0 %v1249
    %1276 = vmatpush.msra.mxu0 %v1248
    %1277 = vmatpush.msra.mxu0 %v1247
    %1278 = vmatpush.msra.mxu0 %v1246
    %1279 = vmatpush.msra.mxu0 %v1245
    %1280 = vmatpush.msra.mxu0 %v1244
    %1281 = vmatpush.msra.mxu0 %v1243
    %1282 = vmatpush.msra.mxu0 %v1242
    %1283 = vmatpush.msra.mxu0 %v1241
    %1284 = vmatpush.msra.mxu0 %v1240
    %1285 = vmatpush.msra.mxu0 %v1239
    %1286 = vmatpush.msra.mxu0 %v1238
    %1287 = vmatpush.msra.mxu0 %v1237
    %1288 = vmatpush.msra.mxu0 %v1236
    %1289 = vmatmul.f32.gmra.mxu0 %v1235
    %v1290 = vpop.f32.mrf.mxu0
    %v1291 = vadd.f32 0.0, %v1290
    %1292 = vdwg.mxu0
    %v1293 = vmul.f32 %v1291, 0.001953125
    %v1294 = vmul.f32 %v1272, %v1272
    %v1295 = vsub.f32 %v1293, %v1294
    %v1296 = vadd.f32 %v1295, 1e-05
    %v1297 = vrsqrt.pop %v1296
    %v1298 = vmul.f32 %v1297, %v1296
    %v1299 = vmul.f32 %v1298, %v1297
    %v1300 = vmul.f32 0.5, %v1299
    %v1301 = vsub.f32 1.5, %v1300
    %v1302 = vmul.f32 %v1297, %v1301
    %vm1303 = vweird.f32 %v1296
    %vm1304 = vweird.f32 %v1297
    %vm1305 = vmor %vm1303, %vm1304
    %v1306 = vsel %vm1305, %v1297, %v1302
    %v1307 = vld [vmem:[%s15] sm:$0x1]
    %v1308 = vmul.f32 %v1307, %v1306
    %v1309 = vld [vmem:[%s16] sm:$0x1]
    %v1310 = vmul.f32 %v1272, %v1308
    %v1311 = vsub.f32 %v1309, %v1310
    %v1313 = vperm.slane %v1308, 0
    %v1315 = vmul.f32 %v1205, %v1313
    %v1316 = vmul.f32 %v1207, %v1313
    %v1317 = vmul.f32 %v1210, %v1313
    %v1318 = vmul.f32 %v1212, %v1313
    %v1320 = vperm.slane %v1311, 0
    %v1322 = vadd.f32 %v1315, %v1320
    %v1323 = vadd.f32 %v1316, %v1320
    %v1324 = vadd.f32 %v1317, %v1320
    %v1325 = vadd.f32 %v1318, %v1320
    %v1326 = vmax.f32 %v1322, 0.0
    %v1327 = vmax.f32 %v1323, 0.0
    %v1328 = vmax.f32 %v1324, 0.0
    %v1329 = vmax.f32 %v1325, 0.0
    %1330 = vst [vmem:[#allocation16] sm:$0xff] %v1326
    %1331 = vst [vmem:[#allocation16 + $0x8] sm:$0xff] %v1327
    %1332 = vst [vmem:[#allocation16 + $0x10] sm:$0xff] %v1328
    %1333 = vst [vmem:[#allocation16 + $0x18] sm:$0xff] %v1329
    // Predicated region
    $region106: #{tpu_custom_call.1} parent=1 // pred_check
      _
    $region107: #{tpu_custom_call.1} parent=1 // pred_check_branch
      %1335 = sbr.rel (0) target = $region109
    $region108: #{tpu_custom_call.1} parent=1 // pred_region
      %1337 = vsyncadd [#allocation4], 0
      %s1338 = sshll.u32 [#allocation16], 4
      %s1339 = int_to_ptr.vmem [resolvable:$true] %s1338
      %s1340 = sshll.u32 %s18, 4
      %s1341 = int_to_ptr.hbm [resolvable:$true] %s1340
      %1346 = dma.vmem_to_hbm [thread:$0]  %s1339, 512, %s1341, [#allocation4], 128, 128, 8
    $region109: #{tpu_custom_call.1} parent=1 // pred_fallthru
      _
    // Predicated region
    $region110: #{tpu_custom_call.1} parent=1 // pred_check
      _
    $region111: #{tpu_custom_call.1} parent=1 // pred_check_branch
      %1348 = sbr.rel (0) target = $region113
    $region112: #{tpu_custom_call.1} parent=1 // pred_region
      %1350 = dma.done [#allocation4], 512
    $region113: #{tpu_custom_call.1} parent=1 // pred_fallthru
      _
    %1351 = vsyncpa [#allocation3], 1
    %1352 = vsyncpa [#allocation6], 1
    %1353 = vsyncpa [#allocation9], 1
    %1354 = vsyncpa [#allocation12], 1
    %1355 = vsyncpa [#allocation15], 1
    %1356 = vsyncpa [#allocation4], 1

</llo_original>
